<compile_context>
chip_gen: v7x
topology: tpu7x:2x2x1
jax: 0.10.0
libtpu: 0.0.40
codegen_flags: <defaults>
</compile_context>

<pallas_src>
import functools

import jax
import jax.numpy as jnp
from jax.experimental import pallas as pl
from jax.experimental.pallas import tpu as pltpu

LANE_PAD = 128  # pad every channel dim to a full 128-lane vreg width


# ----------------------------------------------------------------------------
# Pallas kernel: full 8-layer GraphConv stack, fused.
#   a_ref : (N, N)        bf16   normalized adjacency
#   x_ref : (N, 128)      f32    zero-padded input features
#   w_ref : (L, 128, 128) bf16   zero-padded, stacked layer weights
#   b_ref : (L, 128)      f32    zero-padded, stacked layer biases
#   o_ref : (N, 128)      f32    padded output slab
#   h_ref : (N, 128)      f32    VMEM scratch holding the activation between layers
# ----------------------------------------------------------------------------
def _gcn_stack_kernel(a_ref, x_ref, w_ref, b_ref, o_ref, h_ref, *, num_layers):
    h_ref[...] = x_ref[...]
    a_bf = a_ref[...]  # already bf16; loaded once, reused by every layer

    for l in range(num_layers):  # static unrolled layer loop
        # X @ W  (feature transform)  -- MXU, bf16 operands, f32 accumulation
        xw = jnp.dot(
            h_ref[...].astype(jnp.bfloat16),
            w_ref[l],
            preferred_element_type=jnp.float32,
        )
        # A_hat @ (X W)  (normalized neighborhood aggregation) -- MXU
        agg = jnp.dot(
            a_bf,
            xw.astype(jnp.bfloat16),
            preferred_element_type=jnp.float32,
        )
        out = agg + b_ref[pl.ds(l, 1), :]  # (1,128) bias broadcast over nodes, f32
        if l < num_layers - 1:
            h_ref[...] = jnp.maximum(out, 0.0)  # relu, keep in VMEM scratch
        else:
            # dropout(p=0.25) in eval mode -> identity; final layer: sigmoid
            o_ref[...] = jax.nn.sigmoid(out)


def gcn_stack(a_hat, features, params):
    """Run the whole GraphConv stack in one fused Pallas call.

    a_hat:    (N, N) normalized adjacency, f32
    features: (N, C_in) node features, f32
    params:   list of (W (C_in, C_out), b (1, C_out)) per layer
    returns:  (N, C_out_last) f32
    """
    n, c_in = features.shape
    num_layers = len(params)
    c_out_last = params[-1][0].shape[1]

    # --- zero-pad channels to 128 lanes and stack layer params (plain JAX glue)
    x_pad = jnp.zeros((n, LANE_PAD), jnp.float32).at[:, :c_in].set(features)
    w_stack = jnp.zeros((num_layers, LANE_PAD, LANE_PAD), jnp.float32)
    b_stack = jnp.zeros((num_layers, LANE_PAD), jnp.float32)
    for l, (w, b) in enumerate(params):
        w_stack = w_stack.at[l, : w.shape[0], : w.shape[1]].set(w)
        b_stack = b_stack.at[l, : b.shape[1]].set(b[0])

    a_bf = a_hat.astype(jnp.bfloat16)
    w_bf = w_stack.astype(jnp.bfloat16)

    kernel = functools.partial(_gcn_stack_kernel, num_layers=num_layers)
    out_pad = pl.pallas_call(
        kernel,
        out_shape=jax.ShapeDtypeStruct((n, LANE_PAD), jnp.float32),
        # Whole (small) arrays as single VMEM blocks (block_shape == array shape).
        in_specs=[
            pl.BlockSpec(a_bf.shape, lambda: (0, 0)),
            pl.BlockSpec(x_pad.shape, lambda: (0, 0)),
            pl.BlockSpec(w_bf.shape, lambda: (0, 0, 0)),
            pl.BlockSpec(b_stack.shape, lambda: (0, 0)),
        ],
        out_specs=pl.BlockSpec((n, LANE_PAD), lambda: (0, 0)),
        scratch_shapes=[pltpu.VMEM((n, LANE_PAD), jnp.float32)],
    )(a_bf, x_pad, w_bf, b_stack)

    # Slice the real output channels from the lane-padded slab (outside kernel).
    return out_pad[:, :c_out_last]


# ----------------------------------------------------------------------------
# Model: parameter construction + graph preprocessing + forward
# ----------------------------------------------------------------------------
def init_params(key, in_channels=3, out_channels=6, hidden=64):
    dims = [(in_channels, hidden)] + [(hidden, hidden)] * 6 + [(hidden, out_channels)]
    params = []
    for cin, cout in dims:
        key, wk = jax.random.split(key)
        # Xavier-uniform-like deterministic init (DGL uses xavier_uniform_, zero bias)
        limit = jnp.sqrt(6.0 / (cin + cout))
        w = jax.random.uniform(wk, (cin, cout), jnp.float32, -limit, limit)
        b = jnp.zeros((1, cout), jnp.float32)
        params.append((w, b))
    return params


def build_normalized_adjacency(src, dst, num_nodes):
    """Dense A_hat = D_dst^{-1/2} A D_src^{-1/2}, A[dst, src] = 1 per edge."""
    a = jnp.zeros((num_nodes, num_nodes), jnp.float32)
    a = a.at[dst, src].add(1.0)
    out_deg = jnp.clip(a.sum(axis=0), 1.0)  # out-degree of src nodes
    in_deg = jnp.clip(a.sum(axis=1), 1.0)   # in-degree of dst nodes
    norm_src = out_deg ** -0.5              # applied on source side (columns)
    norm_dst = in_deg ** -0.5               # applied on dest side (rows)
    return norm_dst[:, None] * a * norm_src[None, :]


def graph_conv_net_forward(a_hat, features, params):
    return gcn_stack(a_hat, features, params)


# ----------------------------------------------------------------------------
# Pure-JAX reference with matching bf16 matmul operands (for a sanity check)
# ----------------------------------------------------------------------------
def reference_forward(a_hat, features, params):
    a_bf = a_hat.astype(jnp.bfloat16)
    x = features
    for i, (w, b) in enumerate(params):
        xw = jnp.dot(x.astype(jnp.bfloat16), w.astype(jnp.bfloat16),
                     preferred_element_type=jnp.float32)
        agg = jnp.dot(a_bf, xw.astype(jnp.bfloat16),
                      preferred_element_type=jnp.float32)
        out = agg + b
        if i < len(params) - 1:
            x = jnp.maximum(out, 0.0)
        else:
            x = jax.nn.sigmoid(out)
    return x


if __name__ == "__main__":
    key = jax.random.PRNGKey(0)

    num_nodes = 16
    in_channels = 3
    out_channels = 6

    # Deterministic small random graph (edge list) and node features.
    key, ek, fk, pk = jax.random.split(key, 4)
    num_edges = 48
    src = jax.random.randint(ek, (num_edges,), 0, num_nodes)
    dst = jax.random.randint(jax.random.fold_in(ek, 1), (num_edges,), 0, num_nodes)
    features = jax.random.normal(fk, (num_nodes, in_channels), jnp.float32)

    a_hat = build_normalized_adjacency(src, dst, num_nodes)
    params = init_params(pk, in_channels, out_channels)

    out = graph_conv_net_forward(a_hat, features, params)
    out = jax.block_until_ready(out)

    ref = reference_forward(a_hat, features, params)
    assert out.shape == (num_nodes, out_channels)
    assert jnp.allclose(out, ref, atol=1e-2, rtol=1e-2), "mismatch vs reference"

    print("KERNEL_OK")
</pallas_src>

<mosaic_0001>
module attributes {stable_mosaic.version = 11 : i64} {
  func.func @_gcn_stack_kernel(%arg0: memref<16x16xbf16, #tpu.memory_space<vmem>>, %arg1: memref<16x128xf32, #tpu.memory_space<vmem>>, %arg2: memref<8x128x128xbf16, #tpu.memory_space<vmem>>, %arg3: memref<8x128xf32, #tpu.memory_space<vmem>>, %arg4: memref<16x128xf32, #tpu.memory_space<vmem>>, %arg5: memref<16x128xf32, #tpu.memory_space<vmem>>) attributes {dimension_semantics = [], scalar_prefetch = 0 : i64, scratch_operands = 1 : i64, tpu.core_type = #tpu.core_type<tc>} {
    %c0 = arith.constant 0 : index
    %c0_0 = arith.constant 0 : index
    %0 = vector.load %arg1[%c0, %c0_0] : memref<16x128xf32, #tpu.memory_space<vmem>>, vector<16x128xf32>
    %c0_1 = arith.constant 0 : index
    %c0_2 = arith.constant 0 : index
    %1 = vector.load %arg5[%c0_1, %c0_2] : memref<16x128xf32, #tpu.memory_space<vmem>>, vector<16x128xf32>
    tpu.vector_store %arg5[%c0_1, %c0_2], %0 {strides = array<i32>} : memref<16x128xf32, #tpu.memory_space<vmem>>, vector<16x128xf32>,
    %c0_3 = arith.constant 0 : index
    %c0_4 = arith.constant 0 : index
    %2 = vector.load %arg0[%c0_3, %c0_4] : memref<16x16xbf16, #tpu.memory_space<vmem>>, vector<16x16xbf16>
    %c0_5 = arith.constant 0 : index
    %c0_6 = arith.constant 0 : index
    %3 = vector.load %arg5[%c0_5, %c0_6] : memref<16x128xf32, #tpu.memory_space<vmem>>, vector<16x128xf32>
    %4 = arith.truncf %3 : vector<16x128xf32> to vector<16x128xbf16>
    %c0_7 = arith.constant 0 : index
    %c0_8 = arith.constant 0 : index
    %c0_9 = arith.constant 0 : index
    %5 = vector.load %arg2[%c0_7, %c0_8, %c0_9] : memref<8x128x128xbf16, #tpu.memory_space<vmem>>, vector<1x128x128xbf16>
    %6 = vector.shape_cast %5 : vector<1x128x128xbf16> to vector<128x128xbf16>
    %cst = arith.constant dense<0.000000e+00> : vector<16x128xf32>
    %7 = tpu.matmul %4, %6, %cst {dimension_numbers = #tpu.dot_dimension_numbers<[1], [0], [0], [1], [0, 0, 1, 1], [], []>} : vector<16x128xbf16>, vector<128x128xbf16>, vector<16x128xf32> -> vector<16x128xf32>
    %8 = arith.truncf %7 : vector<16x128xf32> to vector<16x128xbf16>
    %cst_10 = arith.constant dense<0.000000e+00> : vector<16x128xf32>
    %9 = tpu.matmul %2, %8, %cst_10 {dimension_numbers = #tpu.dot_dimension_numbers<[1], [0], [0], [1], [0, 0, 1, 1], [], []>} : vector<16x16xbf16>, vector<16x128xbf16>, vector<16x128xf32> -> vector<16x128xf32>
    %c0_11 = arith.constant 0 : index
    %c0_12 = arith.constant 0 : index
    %10 = vector.load %arg3[%c0_11, %c0_12] : memref<8x128xf32, #tpu.memory_space<vmem>>, vector<1x128xf32>
    %11 = vector.broadcast %10 : vector<1x128xf32> to vector<16x128xf32>
    %12 = arith.addf %9, %11 : vector<16x128xf32>
    %cst_13 = arith.constant 0.000000e+00 : f32
    %13 = vector.broadcast %cst_13 : f32 to vector<16x128xf32>
    %14 = arith.maximumf %12, %13 : vector<16x128xf32>
    %c0_14 = arith.constant 0 : index
    %c0_15 = arith.constant 0 : index
    %15 = vector.load %arg5[%c0_14, %c0_15] : memref<16x128xf32, #tpu.memory_space<vmem>>, vector<16x128xf32>
    tpu.vector_store %arg5[%c0_14, %c0_15], %14 {strides = array<i32>} : memref<16x128xf32, #tpu.memory_space<vmem>>, vector<16x128xf32>,
    %c0_16 = arith.constant 0 : index
    %c0_17 = arith.constant 0 : index
    %16 = vector.load %arg5[%c0_16, %c0_17] : memref<16x128xf32, #tpu.memory_space<vmem>>, vector<16x128xf32>
    %17 = arith.truncf %16 : vector<16x128xf32> to vector<16x128xbf16>
    %c1 = arith.constant 1 : index
    %c0_18 = arith.constant 0 : index
    %c0_19 = arith.constant 0 : index
    %18 = vector.load %arg2[%c1, %c0_18, %c0_19] : memref<8x128x128xbf16, #tpu.memory_space<vmem>>, vector<1x128x128xbf16>
    %19 = vector.shape_cast %18 : vector<1x128x128xbf16> to vector<128x128xbf16>
    %cst_20 = arith.constant dense<0.000000e+00> : vector<16x128xf32>
    %20 = tpu.matmul %17, %19, %cst_20 {dimension_numbers = #tpu.dot_dimension_numbers<[1], [0], [0], [1], [0, 0, 1, 1], [], []>} : vector<16x128xbf16>, vector<128x128xbf16>, vector<16x128xf32> -> vector<16x128xf32>
    %21 = arith.truncf %20 : vector<16x128xf32> to vector<16x128xbf16>
    %cst_21 = arith.constant dense<0.000000e+00> : vector<16x128xf32>
    %22 = tpu.matmul %2, %21, %cst_21 {dimension_numbers = #tpu.dot_dimension_numbers<[1], [0], [0], [1], [0, 0, 1, 1], [], []>} : vector<16x16xbf16>, vector<16x128xbf16>, vector<16x128xf32> -> vector<16x128xf32>
    %c1_22 = arith.constant 1 : index
    %c0_23 = arith.constant 0 : index
    %23 = vector.load %arg3[%c1_22, %c0_23] : memref<8x128xf32, #tpu.memory_space<vmem>>, vector<1x128xf32>
    %24 = vector.broadcast %23 : vector<1x128xf32> to vector<16x128xf32>
    %25 = arith.addf %22, %24 : vector<16x128xf32>
    %cst_24 = arith.constant 0.000000e+00 : f32
    %26 = vector.broadcast %cst_24 : f32 to vector<16x128xf32>
    %27 = arith.maximumf %25, %26 : vector<16x128xf32>
    %c0_25 = arith.constant 0 : index
    %c0_26 = arith.constant 0 : index
    %28 = vector.load %arg5[%c0_25, %c0_26] : memref<16x128xf32, #tpu.memory_space<vmem>>, vector<16x128xf32>
    tpu.vector_store %arg5[%c0_25, %c0_26], %27 {strides = array<i32>} : memref<16x128xf32, #tpu.memory_space<vmem>>, vector<16x128xf32>,
    %c0_27 = arith.constant 0 : index
    %c0_28 = arith.constant 0 : index
    %29 = vector.load %arg5[%c0_27, %c0_28] : memref<16x128xf32, #tpu.memory_space<vmem>>, vector<16x128xf32>
    %30 = arith.truncf %29 : vector<16x128xf32> to vector<16x128xbf16>
    %c2 = arith.constant 2 : index
    %c0_29 = arith.constant 0 : index
    %c0_30 = arith.constant 0 : index
    %31 = vector.load %arg2[%c2, %c0_29, %c0_30] : memref<8x128x128xbf16, #tpu.memory_space<vmem>>, vector<1x128x128xbf16>
    %32 = vector.shape_cast %31 : vector<1x128x128xbf16> to vector<128x128xbf16>
    %cst_31 = arith.constant dense<0.000000e+00> : vector<16x128xf32>
    %33 = tpu.matmul %30, %32, %cst_31 {dimension_numbers = #tpu.dot_dimension_numbers<[1], [0], [0], [1], [0, 0, 1, 1], [], []>} : vector<16x128xbf16>, vector<128x128xbf16>, vector<16x128xf32> -> vector<16x128xf32>
    %34 = arith.truncf %33 : vector<16x128xf32> to vector<16x128xbf16>
    %cst_32 = arith.constant dense<0.000000e+00> : vector<16x128xf32>
    %35 = tpu.matmul %2, %34, %cst_32 {dimension_numbers = #tpu.dot_dimension_numbers<[1], [0], [0], [1], [0, 0, 1, 1], [], []>} : vector<16x16xbf16>, vector<16x128xbf16>, vector<16x128xf32> -> vector<16x128xf32>
    %c2_33 = arith.constant 2 : index
    %c0_34 = arith.constant 0 : index
    %36 = vector.load %arg3[%c2_33, %c0_34] : memref<8x128xf32, #tpu.memory_space<vmem>>, vector<1x128xf32>
    %37 = vector.broadcast %36 : vector<1x128xf32> to vector<16x128xf32>
    %38 = arith.addf %35, %37 : vector<16x128xf32>
    %cst_35 = arith.constant 0.000000e+00 : f32
    %39 = vector.broadcast %cst_35 : f32 to vector<16x128xf32>
    %40 = arith.maximumf %38, %39 : vector<16x128xf32>
    %c0_36 = arith.constant 0 : index
    %c0_37 = arith.constant 0 : index
    %41 = vector.load %arg5[%c0_36, %c0_37] : memref<16x128xf32, #tpu.memory_space<vmem>>, vector<16x128xf32>
    tpu.vector_store %arg5[%c0_36, %c0_37], %40 {strides = array<i32>} : memref<16x128xf32, #tpu.memory_space<vmem>>, vector<16x128xf32>,
    %c0_38 = arith.constant 0 : index
    %c0_39 = arith.constant 0 : index
    %42 = vector.load %arg5[%c0_38, %c0_39] : memref<16x128xf32, #tpu.memory_space<vmem>>, vector<16x128xf32>
    %43 = arith.truncf %42 : vector<16x128xf32> to vector<16x128xbf16>
    %c3 = arith.constant 3 : index
    %c0_40 = arith.constant 0 : index
    %c0_41 = arith.constant 0 : index
    %44 = vector.load %arg2[%c3, %c0_40, %c0_41] : memref<8x128x128xbf16, #tpu.memory_space<vmem>>, vector<1x128x128xbf16>
    %45 = vector.shape_cast %44 : vector<1x128x128xbf16> to vector<128x128xbf16>
    %cst_42 = arith.constant dense<0.000000e+00> : vector<16x128xf32>
    %46 = tpu.matmul %43, %45, %cst_42 {dimension_numbers = #tpu.dot_dimension_numbers<[1], [0], [0], [1], [0, 0, 1, 1], [], []>} : vector<16x128xbf16>, vector<128x128xbf16>, vector<16x128xf32> -> vector<16x128xf32>
    %47 = arith.truncf %46 : vector<16x128xf32> to vector<16x128xbf16>
    %cst_43 = arith.constant dense<0.000000e+00> : vector<16x128xf32>
    %48 = tpu.matmul %2, %47, %cst_43 {dimension_numbers = #tpu.dot_dimension_numbers<[1], [0], [0], [1], [0, 0, 1, 1], [], []>} : vector<16x16xbf16>, vector<16x128xbf16>, vector<16x128xf32> -> vector<16x128xf32>
    %c3_44 = arith.constant 3 : index
    %c0_45 = arith.constant 0 : index
    %49 = vector.load %arg3[%c3_44, %c0_45] : memref<8x128xf32, #tpu.memory_space<vmem>>, vector<1x128xf32>
    %50 = vector.broadcast %49 : vector<1x128xf32> to vector<16x128xf32>
    %51 = arith.addf %48, %50 : vector<16x128xf32>
    %cst_46 = arith.constant 0.000000e+00 : f32
    %52 = vector.broadcast %cst_46 : f32 to vector<16x128xf32>
    %53 = arith.maximumf %51, %52 : vector<16x128xf32>
    %c0_47 = arith.constant 0 : index
    %c0_48 = arith.constant 0 : index
    %54 = vector.load %arg5[%c0_47, %c0_48] : memref<16x128xf32, #tpu.memory_space<vmem>>, vector<16x128xf32>
    tpu.vector_store %arg5[%c0_47, %c0_48], %53 {strides = array<i32>} : memref<16x128xf32, #tpu.memory_space<vmem>>, vector<16x128xf32>,
    %c0_49 = arith.constant 0 : index
    %c0_50 = arith.constant 0 : index
    %55 = vector.load %arg5[%c0_49, %c0_50] : memref<16x128xf32, #tpu.memory_space<vmem>>, vector<16x128xf32>
    %56 = arith.truncf %55 : vector<16x128xf32> to vector<16x128xbf16>
    %c4 = arith.constant 4 : index
    %c0_51 = arith.constant 0 : index
    %c0_52 = arith.constant 0 : index
    %57 = vector.load %arg2[%c4, %c0_51, %c0_52] : memref<8x128x128xbf16, #tpu.memory_space<vmem>>, vector<1x128x128xbf16>
    %58 = vector.shape_cast %57 : vector<1x128x128xbf16> to vector<128x128xbf16>
    %cst_53 = arith.constant dense<0.000000e+00> : vector<16x128xf32>
    %59 = tpu.matmul %56, %58, %cst_53 {dimension_numbers = #tpu.dot_dimension_numbers<[1], [0], [0], [1], [0, 0, 1, 1], [], []>} : vector<16x128xbf16>, vector<128x128xbf16>, vector<16x128xf32> -> vector<16x128xf32>
    %60 = arith.truncf %59 : vector<16x128xf32> to vector<16x128xbf16>
    %cst_54 = arith.constant dense<0.000000e+00> : vector<16x128xf32>
    %61 = tpu.matmul %2, %60, %cst_54 {dimension_numbers = #tpu.dot_dimension_numbers<[1], [0], [0], [1], [0, 0, 1, 1], [], []>} : vector<16x16xbf16>, vector<16x128xbf16>, vector<16x128xf32> -> vector<16x128xf32>
    %c4_55 = arith.constant 4 : index
    %c0_56 = arith.constant 0 : index
    %62 = vector.load %arg3[%c4_55, %c0_56] : memref<8x128xf32, #tpu.memory_space<vmem>>, vector<1x128xf32>
    %63 = vector.broadcast %62 : vector<1x128xf32> to vector<16x128xf32>
    %64 = arith.addf %61, %63 : vector<16x128xf32>
    %cst_57 = arith.constant 0.000000e+00 : f32
    %65 = vector.broadcast %cst_57 : f32 to vector<16x128xf32>
    %66 = arith.maximumf %64, %65 : vector<16x128xf32>
    %c0_58 = arith.constant 0 : index
    %c0_59 = arith.constant 0 : index
    %67 = vector.load %arg5[%c0_58, %c0_59] : memref<16x128xf32, #tpu.memory_space<vmem>>, vector<16x128xf32>
    tpu.vector_store %arg5[%c0_58, %c0_59], %66 {strides = array<i32>} : memref<16x128xf32, #tpu.memory_space<vmem>>, vector<16x128xf32>,
    %c0_60 = arith.constant 0 : index
    %c0_61 = arith.constant 0 : index
    %68 = vector.load %arg5[%c0_60, %c0_61] : memref<16x128xf32, #tpu.memory_space<vmem>>, vector<16x128xf32>
    %69 = arith.truncf %68 : vector<16x128xf32> to vector<16x128xbf16>
    %c5 = arith.constant 5 : index
    %c0_62 = arith.constant 0 : index
    %c0_63 = arith.constant 0 : index
    %70 = vector.load %arg2[%c5, %c0_62, %c0_63] : memref<8x128x128xbf16, #tpu.memory_space<vmem>>, vector<1x128x128xbf16>
    %71 = vector.shape_cast %70 : vector<1x128x128xbf16> to vector<128x128xbf16>
    %cst_64 = arith.constant dense<0.000000e+00> : vector<16x128xf32>
    %72 = tpu.matmul %69, %71, %cst_64 {dimension_numbers = #tpu.dot_dimension_numbers<[1], [0], [0], [1], [0, 0, 1, 1], [], []>} : vector<16x128xbf16>, vector<128x128xbf16>, vector<16x128xf32> -> vector<16x128xf32>
    %73 = arith.truncf %72 : vector<16x128xf32> to vector<16x128xbf16>
    %cst_65 = arith.constant dense<0.000000e+00> : vector<16x128xf32>
    %74 = tpu.matmul %2, %73, %cst_65 {dimension_numbers = #tpu.dot_dimension_numbers<[1], [0], [0], [1], [0, 0, 1, 1], [], []>} : vector<16x16xbf16>, vector<16x128xbf16>, vector<16x128xf32> -> vector<16x128xf32>
    %c5_66 = arith.constant 5 : index
    %c0_67 = arith.constant 0 : index
    %75 = vector.load %arg3[%c5_66, %c0_67] : memref<8x128xf32, #tpu.memory_space<vmem>>, vector<1x128xf32>
    %76 = vector.broadcast %75 : vector<1x128xf32> to vector<16x128xf32>
    %77 = arith.addf %74, %76 : vector<16x128xf32>
    %cst_68 = arith.constant 0.000000e+00 : f32
    %78 = vector.broadcast %cst_68 : f32 to vector<16x128xf32>
    %79 = arith.maximumf %77, %78 : vector<16x128xf32>
    %c0_69 = arith.constant 0 : index
    %c0_70 = arith.constant 0 : index
    %80 = vector.load %arg5[%c0_69, %c0_70] : memref<16x128xf32, #tpu.memory_space<vmem>>, vector<16x128xf32>
    tpu.vector_store %arg5[%c0_69, %c0_70], %79 {strides = array<i32>} : memref<16x128xf32, #tpu.memory_space<vmem>>, vector<16x128xf32>,
    %c0_71 = arith.constant 0 : index
    %c0_72 = arith.constant 0 : index
    %81 = vector.load %arg5[%c0_71, %c0_72] : memref<16x128xf32, #tpu.memory_space<vmem>>, vector<16x128xf32>
    %82 = arith.truncf %81 : vector<16x128xf32> to vector<16x128xbf16>
    %c6 = arith.constant 6 : index
    %c0_73 = arith.constant 0 : index
    %c0_74 = arith.constant 0 : index
    %83 = vector.load %arg2[%c6, %c0_73, %c0_74] : memref<8x128x128xbf16, #tpu.memory_space<vmem>>, vector<1x128x128xbf16>
    %84 = vector.shape_cast %83 : vector<1x128x128xbf16> to vector<128x128xbf16>
    %cst_75 = arith.constant dense<0.000000e+00> : vector<16x128xf32>
    %85 = tpu.matmul %82, %84, %cst_75 {dimension_numbers = #tpu.dot_dimension_numbers<[1], [0], [0], [1], [0, 0, 1, 1], [], []>} : vector<16x128xbf16>, vector<128x128xbf16>, vector<16x128xf32> -> vector<16x128xf32>
    %86 = arith.truncf %85 : vector<16x128xf32> to vector<16x128xbf16>
    %cst_76 = arith.constant dense<0.000000e+00> : vector<16x128xf32>
    %87 = tpu.matmul %2, %86, %cst_76 {dimension_numbers = #tpu.dot_dimension_numbers<[1], [0], [0], [1], [0, 0, 1, 1], [], []>} : vector<16x16xbf16>, vector<16x128xbf16>, vector<16x128xf32> -> vector<16x128xf32>
    %c6_77 = arith.constant 6 : index
    %c0_78 = arith.constant 0 : index
    %88 = vector.load %arg3[%c6_77, %c0_78] : memref<8x128xf32, #tpu.memory_space<vmem>>, vector<1x128xf32>
    %89 = vector.broadcast %88 : vector<1x128xf32> to vector<16x128xf32>
    %90 = arith.addf %87, %89 : vector<16x128xf32>
    %cst_79 = arith.constant 0.000000e+00 : f32
    %91 = vector.broadcast %cst_79 : f32 to vector<16x128xf32>
    %92 = arith.maximumf %90, %91 : vector<16x128xf32>
    %c0_80 = arith.constant 0 : index
    %c0_81 = arith.constant 0 : index
    %93 = vector.load %arg5[%c0_80, %c0_81] : memref<16x128xf32, #tpu.memory_space<vmem>>, vector<16x128xf32>
    tpu.vector_store %arg5[%c0_80, %c0_81], %92 {strides = array<i32>} : memref<16x128xf32, #tpu.memory_space<vmem>>, vector<16x128xf32>,
    %c0_82 = arith.constant 0 : index
    %c0_83 = arith.constant 0 : index
    %94 = vector.load %arg5[%c0_82, %c0_83] : memref<16x128xf32, #tpu.memory_space<vmem>>, vector<16x128xf32>
    %95 = arith.truncf %94 : vector<16x128xf32> to vector<16x128xbf16>
    %c7 = arith.constant 7 : index
    %c0_84 = arith.constant 0 : index
    %c0_85 = arith.constant 0 : index
    %96 = vector.load %arg2[%c7, %c0_84, %c0_85] : memref<8x128x128xbf16, #tpu.memory_space<vmem>>, vector<1x128x128xbf16>
    %97 = vector.shape_cast %96 : vector<1x128x128xbf16> to vector<128x128xbf16>
    %cst_86 = arith.constant dense<0.000000e+00> : vector<16x128xf32>
    %98 = tpu.matmul %95, %97, %cst_86 {dimension_numbers = #tpu.dot_dimension_numbers<[1], [0], [0], [1], [0, 0, 1, 1], [], []>} : vector<16x128xbf16>, vector<128x128xbf16>, vector<16x128xf32> -> vector<16x128xf32>
    %99 = arith.truncf %98 : vector<16x128xf32> to vector<16x128xbf16>
    %cst_87 = arith.constant dense<0.000000e+00> : vector<16x128xf32>
    %100 = tpu.matmul %2, %99, %cst_87 {dimension_numbers = #tpu.dot_dimension_numbers<[1], [0], [0], [1], [0, 0, 1, 1], [], []>} : vector<16x16xbf16>, vector<16x128xbf16>, vector<16x128xf32> -> vector<16x128xf32>
    %c7_88 = arith.constant 7 : index
    %c0_89 = arith.constant 0 : index
    %101 = vector.load %arg3[%c7_88, %c0_89] : memref<8x128xf32, #tpu.memory_space<vmem>>, vector<1x128xf32>
    %102 = vector.broadcast %101 : vector<1x128xf32> to vector<16x128xf32>
    %103 = arith.addf %100, %102 : vector<16x128xf32>
    %104 = arith.negf %103 : vector<16x128xf32>
    %105 = math.exp %104 : vector<16x128xf32>
    %cst_90 = arith.constant 1.000000e+00 : f32
    %106 = vector.broadcast %cst_90 : f32 to vector<16x128xf32>
    %107 = arith.addf %106, %105 : vector<16x128xf32>
    %108 = arith.divf %106, %107 : vector<16x128xf32>
    %c0_91 = arith.constant 0 : index
    %c0_92 = arith.constant 0 : index
    %109 = vector.load %arg4[%c0_91, %c0_92] : memref<16x128xf32, #tpu.memory_space<vmem>>, vector<16x128xf32>
    tpu.vector_store %arg4[%c0_91, %c0_92], %108 {strides = array<i32>} : memref<16x128xf32, #tpu.memory_space<vmem>>, vector<16x128xf32>,
    return
  }
}

</mosaic_0001>

<llo_original>
// kernel: tpu_custom_call.1
$region0: #{tpu_custom_call.1}
  #allocation0 [shape = 'u32[]', space=smem, size = 0x4, offset = 0x4, fixed_abs, tag = 'smem constant byte address 0x4 - core index']
  #allocation1 [shape = 'u32[144,128]{1,0:T(1,128)}', space=vmem, size = 0x12000, scoped, tag = 'internal scratch']
  #allocation2 [shape = 'f32[16,128]{1,0:T(8,128)}', space=vmem, size = 0x2000, scoped, tag = 'scratch operand']
  %s0 = inlined_call_operand.hbm [shape: bf16[16,16], index: 0, kind: input, shape index: {}]
  %s1 = inlined_call_operand.hbm [shape: f32[16,128], index: 1, kind: input, shape index: {}]
  %s2 = inlined_call_operand.hbm [shape: bf16[8,128,128], index: 2, kind: input, shape index: {}]
  %s3 = inlined_call_operand.vmem [shape: f32[8,128], index: 3, kind: input, shape index: {}]
  %s4 = inlined_call_operand.hbm [shape: f32[16,128], index: 4, kind: output, shape index: {}]
  %s5 = sld [smem:[#allocation0]]
  $region38: #{tpu_custom_call.1} parent=0
    _
  %s7 = ssub.s32 1, %s5
  %s8 = scalar_select 0, %s7, %s5
  $region1: #{tpu_custom_call.1} parent=0
    #allocation3 [shape = 'u8[4096]{0}', space=vmem, size = 0x1000, scoped, tag = 'input window, operand 0, single buffered']
    #allocation4 [shape = 's32[1]{0}', space=sflag, size = 0x4, scoped, tag = 'scoped memory for tpu_custom_call.1']
    #allocation5 [shape = 's32[1]{0}', space=sflag, size = 0x4, scoped, tag = 'scoped memory for tpu_custom_call.1']
    #allocation6 [shape = 'u8[8192]{0}', space=vmem, size = 0x2000, scoped, tag = 'input window, operand 1, single buffered']
    #allocation7 [shape = 's32[1]{0}', space=sflag, size = 0x4, scoped, tag = 'scoped memory for tpu_custom_call.1']
    #allocation8 [shape = 'u8[262144]{0}', space=vmem, size = 0x40000, scoped, tag = 'input window, operand 2, single buffered']
    #allocation9 [shape = 'u8[8192]{0}', space=vmem, size = 0x2000, scoped, tag = 'output window, operand 0, single buffered']
    %9 = vsyncpa [#allocation4], 0
    %10 = vsyncpa [#allocation7], 0
    %11 = vsyncpa [#allocation5], 0
    // Predicated region
    $region2: #{tpu_custom_call.1} parent=1 // pred_check
      _
    $region3: #{tpu_custom_call.1} parent=1 // pred_check_branch
      %13 = sbr.rel (0) target = $region5
    $region4: #{tpu_custom_call.1} parent=1 // pred_region
      %s15 = ssub.s32 128, 128
      %16 = vsyncadd [#allocation4], %s15
      %s17 = sshll.u32 [#allocation3], 4
      %s18 = int_to_ptr.vmem [resolvable:$true] %s17
      %23 = dma.hbm_to_vmem [thread:$0]  %s0, 128, %s18, [#allocation4], 64, 64, 4
    $region5: #{tpu_custom_call.1} parent=1 // pred_fallthru
      _
    // Predicated region
    $region6: #{tpu_custom_call.1} parent=1 // pred_check
      _
    $region7: #{tpu_custom_call.1} parent=1 // pred_check_branch
      %25 = sbr.rel (0) target = $region9
    $region8: #{tpu_custom_call.1} parent=1 // pred_region
      %s27 = ssub.s32 256, 256
      %28 = vsyncadd [#allocation7], %s27
      %s29 = sshll.u32 [#allocation6], 4
      %s30 = int_to_ptr.vmem [resolvable:$true] %s29
      %35 = dma.hbm_to_vmem [thread:$0]  %s1, 256, %s30, [#allocation7], 128, 128, 8
    $region9: #{tpu_custom_call.1} parent=1 // pred_fallthru
      _
    // Predicated region
    $region10: #{tpu_custom_call.1} parent=1 // pred_check
      _
    $region11: #{tpu_custom_call.1} parent=1 // pred_check_branch
      %37 = sbr.rel (0) target = $region13
    $region12: #{tpu_custom_call.1} parent=1 // pred_region
      %s39 = ssub.s32 8192, 8192
      %40 = vsyncadd [#allocation7], %s39
      %s41 = sshll.u32 [#allocation8], 4
      %s42 = int_to_ptr.vmem [resolvable:$true] %s41
      %47 = dma.hbm_to_vmem [thread:$0]  %s2, 8192, %s42, [#allocation7], 64, 64, 4
    $region13: #{tpu_custom_call.1} parent=1 // pred_fallthru
      _
    // Predicated region
    $region14: #{tpu_custom_call.1} parent=1 // pred_check
      _
    $region15: #{tpu_custom_call.1} parent=1 // pred_check_branch
      %49 = sbr.rel (0) target = $region17
    $region16: #{tpu_custom_call.1} parent=1 // pred_region
      _
    $region17: #{tpu_custom_call.1} parent=1 // pred_fallthru
      _
    // Predicated region
    $region18: #{tpu_custom_call.1} parent=1 // pred_check
      _
    $region19: #{tpu_custom_call.1} parent=1 // pred_check_branch
      %51 = sbr.rel (0) target = $region21
    $region20: #{tpu_custom_call.1} parent=1 // pred_region
      %52 = dma.done [#allocation4], 128
    $region21: #{tpu_custom_call.1} parent=1 // pred_fallthru
      _
    // Predicated region
    $region22: #{tpu_custom_call.1} parent=1 // pred_check
      _
    $region23: #{tpu_custom_call.1} parent=1 // pred_check_branch
      %54 = sbr.rel (0) target = $region25
    $region24: #{tpu_custom_call.1} parent=1 // pred_region
      %55 = dma.done [#allocation7], 256
    $region25: #{tpu_custom_call.1} parent=1 // pred_fallthru
      _
    // Predicated region
    $region26: #{tpu_custom_call.1} parent=1 // pred_check
      _
    $region27: #{tpu_custom_call.1} parent=1 // pred_check_branch
      %57 = sbr.rel (0) target = $region29
    $region28: #{tpu_custom_call.1} parent=1 // pred_region
      %58 = dma.done [#allocation7], 8192
    $region29: #{tpu_custom_call.1} parent=1 // pred_fallthru
      _
    %v60 = vld [vmem:[#allocation6] sm:$0xff]
    %v61 = vld [vmem:[#allocation6 + $0x8] sm:$0xff]
    %62 = vst [vmem:[#allocation2] sm:$0xff] %v60
    %63 = vst [vmem:[#allocation2 + $0x8] sm:$0xff] %v61
    %v64 = vld [vmem:[#allocation3] sm:$0xf]
    %v65 = vld [vmem:[#allocation3 + $0x4] sm:$0xf]
    %v66 = vld [vmem:[#allocation2] sm:$0xff]
    %v67 = vld [vmem:[#allocation2 + $0x8] sm:$0xff]
    %v68 = vpack.c.bf16 %v67, %v66
    %v69 = vld [vmem:[#allocation8] sm:$0xf]
    %v70 = vld [vmem:[#allocation8 + $0x4] sm:$0xf]
    %v71 = vld [vmem:[#allocation8 + $0x8] sm:$0xf]
    %v72 = vld [vmem:[#allocation8 + $0xc] sm:$0xf]
    %v73 = vld [vmem:[#allocation8 + $0x10] sm:$0xf]
    %v74 = vld [vmem:[#allocation8 + $0x14] sm:$0xf]
    %v75 = vld [vmem:[#allocation8 + $0x18] sm:$0xf]
    %v76 = vld [vmem:[#allocation8 + $0x1c] sm:$0xf]
    %v77 = vld [vmem:[#allocation8 + $0x20] sm:$0xf]
    %v78 = vld [vmem:[#allocation8 + $0x24] sm:$0xf]
    %v79 = vld [vmem:[#allocation8 + $0x28] sm:$0xf]
    %v80 = vld [vmem:[#allocation8 + $0x2c] sm:$0xf]
    %v81 = vld [vmem:[#allocation8 + $0x30] sm:$0xf]
    %v82 = vld [vmem:[#allocation8 + $0x34] sm:$0xf]
    %v83 = vld [vmem:[#allocation8 + $0x38] sm:$0xf]
    %v84 = vld [vmem:[#allocation8 + $0x3c] sm:$0xf]
    %v101 = vunpack.c.l.b16 %v69
    %v102 = vunpack.c.l.b16 %v70
    %v103 = vunpack.c.l.b16 %v71
    %v104 = vunpack.c.l.b16 %v72
    %v105 = vunpack.c.l.b16 %v73
    %v106 = vunpack.c.l.b16 %v74
    %v107 = vunpack.c.l.b16 %v75
    %v108 = vunpack.c.l.b16 %v76
    %v109 = vunpack.c.l.b16 %v77
    %v110 = vunpack.c.l.b16 %v78
    %v111 = vunpack.c.l.b16 %v79
    %v112 = vunpack.c.l.b16 %v80
    %v113 = vunpack.c.l.b16 %v81
    %v114 = vunpack.c.l.b16 %v82
    %v115 = vunpack.c.l.b16 %v83
    %v116 = vunpack.c.l.b16 %v84
    %v117 = vpack.c.b16 %v102, %v101
    %v118 = vpack.c.b16 %v104, %v103
    %v119 = vpack.c.b16 %v106, %v105
    %v120 = vpack.c.b16 %v108, %v107
    %v121 = vpack.c.b16 %v110, %v109
    %v122 = vpack.c.b16 %v112, %v111
    %v123 = vpack.c.b16 %v114, %v113
    %v124 = vpack.c.b16 %v116, %v115
    %133 = vmatprep.subr.bf16.mxu0 0
    %134 = vmatpush1.bf16.msra.mxu0 %v117
    %135 = vmatprep.subr.bf16.mxu0 0
    %136 = vmatpush1.bf16.msra.mxu0 %v118
    %137 = vmatprep.subr.bf16.mxu0 0
    %138 = vmatpush1.bf16.msra.mxu0 %v119
    %139 = vmatprep.subr.bf16.mxu0 0
    %140 = vmatpush1.bf16.msra.mxu0 %v120
    %141 = vmatprep.subr.bf16.mxu0 0
    %142 = vmatpush1.bf16.msra.mxu0 %v121
    %143 = vmatprep.subr.bf16.mxu0 0
    %144 = vmatpush1.bf16.msra.mxu0 %v122
    %145 = vmatprep.subr.bf16.mxu0 0
    %146 = vmatpush1.bf16.msra.mxu0 %v123
    %147 = vmatprep.subr.bf16.mxu0 0
    %148 = vmatpush1.bf16.msra.mxu0 %v124
    %149 = vmatprep.subr.bf16.mxu0 0
    %150 = vmatpush1.bf16.msra.mxu0 0
    %151 = vmatprep.subr.bf16.mxu0 0
    %152 = vmatpush1.bf16.msra.mxu0 0
    %153 = vmatprep.subr.bf16.mxu0 0
    %154 = vmatpush1.bf16.msra.mxu0 0
    %155 = vmatprep.subr.bf16.mxu0 0
    %156 = vmatpush1.bf16.msra.mxu0 0
    %157 = vmatprep.subr.bf16.mxu0 0
    %158 = vmatpush1.bf16.msra.mxu0 0
    %159 = vmatprep.subr.bf16.mxu0 0
    %160 = vmatpush1.bf16.msra.mxu0 0
    %161 = vmatprep.subr.bf16.mxu0 0
    %162 = vmatpush1.bf16.msra.mxu0 0
    %163 = vmatprep.subr.bf16.mxu0 0
    %164 = vmatpush1.bf16.msra.mxu0 0
    %165 = vmatprep.mubr.bf16.mxu0 0
    %166 = vmatmul.mubr.bf16.gmra.mrb[0].mxu0 %v68
    %v167 = vpop.f32.mrb[0].mxu0
    %v168 = vadd.f32 0.0, %v167
    %v169 = vpop.f32.mrb[0].mxu0
    %v170 = vpop.f32.mrb[0].mxu0
    %v171 = vadd.f32 0.0, %v170
    %v172 = vpop.f32.mrb[0].mxu0
    %173 = vdwg.mxu0
    %v174 = vpack.c.bf16 %v171, %v168
    %v175 = vld [vmem:[%s3] sm:$0x1]
    %v176 = vlaneseq
    %v177 = vshrl.u32 %v176, 7
    %v178 = vsub.s32 0, %v177
    %v179 = vrot.slane %v175, %v178
    %v182 = vunpack.c.l.b16 %v64
    %v183 = vunpack.c.l.b16 %v65
    %v184 = vpack.c.b16 %v183, %v182
    %vm185 = vcmask 130048
    %v187 = vsel %vm185, %v184, 0
    %189 = vmatprep.subr.bf16.mxu0 0
    %190 = vmatpush1.bf16.msra.mxu0 %v174
    %191 = vmatprep.subr.bf16.mxu0 0
    %192 = vmatpush1.bf16.msra.mxu0 0
    %193 = vmatprep.subr.bf16.mxu0 0
    %194 = vmatpush1.bf16.msra.mxu0 0
    %195 = vmatprep.subr.bf16.mxu0 0
    %196 = vmatpush1.bf16.msra.mxu0 0
    %197 = vmatprep.subr.bf16.mxu0 0
    %198 = vmatpush1.bf16.msra.mxu0 0
    %199 = vmatprep.subr.bf16.mxu0 0
    %200 = vmatpush1.bf16.msra.mxu0 0
    %201 = vmatprep.subr.bf16.mxu0 0
    %202 = vmatpush1.bf16.msra.mxu0 0
    %203 = vmatprep.subr.bf16.mxu0 0
    %204 = vmatpush1.bf16.msra.mxu0 0
    %205 = vmatprep.subr.bf16.mxu0 0
    %206 = vmatpush1.bf16.msra.mxu0 0
    %207 = vmatprep.subr.bf16.mxu0 0
    %208 = vmatpush1.bf16.msra.mxu0 0
    %209 = vmatprep.subr.bf16.mxu0 0
    %210 = vmatpush1.bf16.msra.mxu0 0
    %211 = vmatprep.subr.bf16.mxu0 0
    %212 = vmatpush1.bf16.msra.mxu0 0
    %213 = vmatprep.subr.bf16.mxu0 0
    %214 = vmatpush1.bf16.msra.mxu0 0
    %215 = vmatprep.subr.bf16.mxu0 0
    %216 = vmatpush1.bf16.msra.mxu0 0
    %217 = vmatprep.subr.bf16.mxu0 0
    %218 = vmatpush1.bf16.msra.mxu0 0
    %219 = vmatprep.subr.bf16.mxu0 0
    %220 = vmatpush1.bf16.msra.mxu0 0
    %221 = vmatprep.mubr.bf16.mxu0 0
    %222 = vmatmul.mubr.bf16.gmra.mrb[0].mxu0 %v187
    %v223 = vpop.f32.mrb[0].mxu0
    %v224 = vadd.f32 %v179, %v223
    %v225 = vpop.f32.mrb[0].mxu0
    %v226 = vpop.f32.mrb[0].mxu0
    %v227 = vadd.f32 %v179, %v226
    %v228 = vpop.f32.mrb[0].mxu0
    %229 = vdwg.mxu0
    %v230 = vmax.f32 %v224, 0.0
    %v231 = vmax.f32 %v227, 0.0
    %232 = vst [vmem:[#allocation2] sm:$0xff] %v230
    %233 = vst [vmem:[#allocation2 + $0x8] sm:$0xff] %v231
    %v234 = vld [vmem:[#allocation2] sm:$0xff]
    %v235 = vld [vmem:[#allocation2 + $0x8] sm:$0xff]
    %v236 = vpack.c.bf16 %v235, %v234
    %s237 = scalar_lea.vmem [#allocation8], 64
    %v238 = vld [vmem:[%s237] sm:$0xf]
    %v239 = vld [vmem:[%s237 + $0x4] sm:$0xf]
    %v240 = vld [vmem:[%s237 + $0x8] sm:$0xf]
    %v241 = vld [vmem:[%s237 + $0xc] sm:$0xf]
    %v242 = vld [vmem:[%s237 + $0x10] sm:$0xf]
    %v243 = vld [vmem:[%s237 + $0x14] sm:$0xf]
    %v244 = vld [vmem:[%s237 + $0x18] sm:$0xf]
    %v245 = vld [vmem:[%s237 + $0x1c] sm:$0xf]
    %v246 = vld [vmem:[%s237 + $0x20] sm:$0xf]
    %v247 = vld [vmem:[%s237 + $0x24] sm:$0xf]
    %v248 = vld [vmem:[%s237 + $0x28] sm:$0xf]
    %v249 = vld [vmem:[%s237 + $0x2c] sm:$0xf]
    %v250 = vld [vmem:[%s237 + $0x30] sm:$0xf]
    %v251 = vld [vmem:[%s237 + $0x34] sm:$0xf]
    %v252 = vld [vmem:[%s237 + $0x38] sm:$0xf]
    %v253 = vld [vmem:[%s237 + $0x3c] sm:$0xf]
    %v270 = vunpack.c.l.b16 %v238
    %v271 = vunpack.c.l.b16 %v239
    %v272 = vunpack.c.l.b16 %v240
    %v273 = vunpack.c.l.b16 %v241
    %v274 = vunpack.c.l.b16 %v242
    %v275 = vunpack.c.l.b16 %v243
    %v276 = vunpack.c.l.b16 %v244
    %v277 = vunpack.c.l.b16 %v245
    %v278 = vunpack.c.l.b16 %v246
    %v279 = vunpack.c.l.b16 %v247
    %v280 = vunpack.c.l.b16 %v248
    %v281 = vunpack.c.l.b16 %v249
    %v282 = vunpack.c.l.b16 %v250
    %v283 = vunpack.c.l.b16 %v251
    %v284 = vunpack.c.l.b16 %v252
    %v285 = vunpack.c.l.b16 %v253
    %v286 = vpack.c.b16 %v271, %v270
    %v287 = vpack.c.b16 %v273, %v272
    %v288 = vpack.c.b16 %v275, %v274
    %v289 = vpack.c.b16 %v277, %v276
    %v290 = vpack.c.b16 %v279, %v278
    %v291 = vpack.c.b16 %v281, %v280
    %v292 = vpack.c.b16 %v283, %v282
    %v293 = vpack.c.b16 %v285, %v284
    %302 = vmatprep.subr.bf16.mxu0 0
    %303 = vmatpush1.bf16.msra.mxu0 %v286
    %304 = vmatprep.subr.bf16.mxu0 0
    %305 = vmatpush1.bf16.msra.mxu0 %v287
    %306 = vmatprep.subr.bf16.mxu0 0
    %307 = vmatpush1.bf16.msra.mxu0 %v288
    %308 = vmatprep.subr.bf16.mxu0 0
    %309 = vmatpush1.bf16.msra.mxu0 %v289
    %310 = vmatprep.subr.bf16.mxu0 0
    %311 = vmatpush1.bf16.msra.mxu0 %v290
    %312 = vmatprep.subr.bf16.mxu0 0
    %313 = vmatpush1.bf16.msra.mxu0 %v291
    %314 = vmatprep.subr.bf16.mxu0 0
    %315 = vmatpush1.bf16.msra.mxu0 %v292
    %316 = vmatprep.subr.bf16.mxu0 0
    %317 = vmatpush1.bf16.msra.mxu0 %v293
    %318 = vmatprep.subr.bf16.mxu0 0
    %319 = vmatpush1.bf16.msra.mxu0 0
    %320 = vmatprep.subr.bf16.mxu0 0
    %321 = vmatpush1.bf16.msra.mxu0 0
    %322 = vmatprep.subr.bf16.mxu0 0
    %323 = vmatpush1.bf16.msra.mxu0 0
    %324 = vmatprep.subr.bf16.mxu0 0
    %325 = vmatpush1.bf16.msra.mxu0 0
    %326 = vmatprep.subr.bf16.mxu0 0
    %327 = vmatpush1.bf16.msra.mxu0 0
    %328 = vmatprep.subr.bf16.mxu0 0
    %329 = vmatpush1.bf16.msra.mxu0 0
    %330 = vmatprep.subr.bf16.mxu0 0
    %331 = vmatpush1.bf16.msra.mxu0 0
    %332 = vmatprep.subr.bf16.mxu0 0
    %333 = vmatpush1.bf16.msra.mxu0 0
    %334 = vmatprep.mubr.bf16.mxu0 0
    %335 = vmatmul.mubr.bf16.gmra.mrb[0].mxu0 %v236
    %v336 = vpop.f32.mrb[0].mxu0
    %v337 = vadd.f32 0.0, %v336
    %v338 = vpop.f32.mrb[0].mxu0
    %v339 = vpop.f32.mrb[0].mxu0
    %v340 = vadd.f32 0.0, %v339
    %v341 = vpop.f32.mrb[0].mxu0
    %342 = vdwg.mxu0
    %v343 = vpack.c.bf16 %v340, %v337
    %v344 = vld [vmem:[%s3 + $0x1] sm:$0x1]
    %v345 = vlaneseq
    %v346 = vshrl.u32 %v345, 7
    %v347 = vsub.s32 0, %v346
    %v348 = vrot.slane %v344, %v347
    %349 = vmatprep.subr.bf16.mxu0 0
    %350 = vmatpush1.bf16.msra.mxu0 %v343
    %351 = vmatprep.subr.bf16.mxu0 0
    %352 = vmatpush1.bf16.msra.mxu0 0
    %353 = vmatprep.subr.bf16.mxu0 0
    %354 = vmatpush1.bf16.msra.mxu0 0
    %355 = vmatprep.subr.bf16.mxu0 0
    %356 = vmatpush1.bf16.msra.mxu0 0
    %357 = vmatprep.subr.bf16.mxu0 0
    %358 = vmatpush1.bf16.msra.mxu0 0
    %359 = vmatprep.subr.bf16.mxu0 0
    %360 = vmatpush1.bf16.msra.mxu0 0
    %361 = vmatprep.subr.bf16.mxu0 0
    %362 = vmatpush1.bf16.msra.mxu0 0
    %363 = vmatprep.subr.bf16.mxu0 0
    %364 = vmatpush1.bf16.msra.mxu0 0
    %365 = vmatprep.subr.bf16.mxu0 0
    %366 = vmatpush1.bf16.msra.mxu0 0
    %367 = vmatprep.subr.bf16.mxu0 0
    %368 = vmatpush1.bf16.msra.mxu0 0
    %369 = vmatprep.subr.bf16.mxu0 0
    %370 = vmatpush1.bf16.msra.mxu0 0
    %371 = vmatprep.subr.bf16.mxu0 0
    %372 = vmatpush1.bf16.msra.mxu0 0
    %373 = vmatprep.subr.bf16.mxu0 0
    %374 = vmatpush1.bf16.msra.mxu0 0
    %375 = vmatprep.subr.bf16.mxu0 0
    %376 = vmatpush1.bf16.msra.mxu0 0
    %377 = vmatprep.subr.bf16.mxu0 0
    %378 = vmatpush1.bf16.msra.mxu0 0
    %379 = vmatprep.subr.bf16.mxu0 0
    %380 = vmatpush1.bf16.msra.mxu0 0
    %381 = vmatprep.mubr.bf16.mxu0 0
    %382 = vmatmul.mubr.bf16.gmra.mrb[0].mxu0 %v187
    %v383 = vpop.f32.mrb[0].mxu0
    %v384 = vadd.f32 %v348, %v383
    %v385 = vpop.f32.mrb[0].mxu0
    %v386 = vpop.f32.mrb[0].mxu0
    %v387 = vadd.f32 %v348, %v386
    %v388 = vpop.f32.mrb[0].mxu0
    %389 = vdwg.mxu0
    %v390 = vmax.f32 %v384, 0.0
    %v391 = vmax.f32 %v387, 0.0
    %392 = vst [vmem:[#allocation2] sm:$0xff] %v390
    %393 = vst [vmem:[#allocation2 + $0x8] sm:$0xff] %v391
    %v394 = vld [vmem:[#allocation2] sm:$0xff]
    %v395 = vld [vmem:[#allocation2 + $0x8] sm:$0xff]
    %v396 = vpack.c.bf16 %v395, %v394
    %s397 = scalar_lea.vmem [#allocation8], 128
    %v398 = vld [vmem:[%s397] sm:$0xf]
    %v399 = vld [vmem:[%s397 + $0x4] sm:$0xf]
    %v400 = vld [vmem:[%s397 + $0x8] sm:$0xf]
    %v401 = vld [vmem:[%s397 + $0xc] sm:$0xf]
    %v402 = vld [vmem:[%s397 + $0x10] sm:$0xf]
    %v403 = vld [vmem:[%s397 + $0x14] sm:$0xf]
    %v404 = vld [vmem:[%s397 + $0x18] sm:$0xf]
    %v405 = vld [vmem:[%s397 + $0x1c] sm:$0xf]
    %v406 = vld [vmem:[%s397 + $0x20] sm:$0xf]
    %v407 = vld [vmem:[%s397 + $0x24] sm:$0xf]
    %v408 = vld [vmem:[%s397 + $0x28] sm:$0xf]
    %v409 = vld [vmem:[%s397 + $0x2c] sm:$0xf]
    %v410 = vld [vmem:[%s397 + $0x30] sm:$0xf]
    %v411 = vld [vmem:[%s397 + $0x34] sm:$0xf]
    %v412 = vld [vmem:[%s397 + $0x38] sm:$0xf]
    %v413 = vld [vmem:[%s397 + $0x3c] sm:$0xf]
    %v430 = vunpack.c.l.b16 %v398
    %v431 = vunpack.c.l.b16 %v399
    %v432 = vunpack.c.l.b16 %v400
    %v433 = vunpack.c.l.b16 %v401
    %v434 = vunpack.c.l.b16 %v402
    %v435 = vunpack.c.l.b16 %v403
    %v436 = vunpack.c.l.b16 %v404
    %v437 = vunpack.c.l.b16 %v405
    %v438 = vunpack.c.l.b16 %v406
    %v439 = vunpack.c.l.b16 %v407
    %v440 = vunpack.c.l.b16 %v408
    %v441 = vunpack.c.l.b16 %v409
    %v442 = vunpack.c.l.b16 %v410
    %v443 = vunpack.c.l.b16 %v411
    %v444 = vunpack.c.l.b16 %v412
    %v445 = vunpack.c.l.b16 %v413
    %v446 = vpack.c.b16 %v431, %v430
    %v447 = vpack.c.b16 %v433, %v432
    %v448 = vpack.c.b16 %v435, %v434
    %v449 = vpack.c.b16 %v437, %v436
    %v450 = vpack.c.b16 %v439, %v438
    %v451 = vpack.c.b16 %v441, %v440
    %v452 = vpack.c.b16 %v443, %v442
    %v453 = vpack.c.b16 %v445, %v444
    %462 = vmatprep.subr.bf16.mxu0 0
    %463 = vmatpush1.bf16.msra.mxu0 %v446
    %464 = vmatprep.subr.bf16.mxu0 0
    %465 = vmatpush1.bf16.msra.mxu0 %v447
    %466 = vmatprep.subr.bf16.mxu0 0
    %467 = vmatpush1.bf16.msra.mxu0 %v448
    %468 = vmatprep.subr.bf16.mxu0 0
    %469 = vmatpush1.bf16.msra.mxu0 %v449
    %470 = vmatprep.subr.bf16.mxu0 0
    %471 = vmatpush1.bf16.msra.mxu0 %v450
    %472 = vmatprep.subr.bf16.mxu0 0
    %473 = vmatpush1.bf16.msra.mxu0 %v451
    %474 = vmatprep.subr.bf16.mxu0 0
    %475 = vmatpush1.bf16.msra.mxu0 %v452
    %476 = vmatprep.subr.bf16.mxu0 0
    %477 = vmatpush1.bf16.msra.mxu0 %v453
    %478 = vmatprep.subr.bf16.mxu0 0
    %479 = vmatpush1.bf16.msra.mxu0 0
    %480 = vmatprep.subr.bf16.mxu0 0
    %481 = vmatpush1.bf16.msra.mxu0 0
    %482 = vmatprep.subr.bf16.mxu0 0
    %483 = vmatpush1.bf16.msra.mxu0 0
    %484 = vmatprep.subr.bf16.mxu0 0
    %485 = vmatpush1.bf16.msra.mxu0 0
    %486 = vmatprep.subr.bf16.mxu0 0
    %487 = vmatpush1.bf16.msra.mxu0 0
    %488 = vmatprep.subr.bf16.mxu0 0
    %489 = vmatpush1.bf16.msra.mxu0 0
    %490 = vmatprep.subr.bf16.mxu0 0
    %491 = vmatpush1.bf16.msra.mxu0 0
    %492 = vmatprep.subr.bf16.mxu0 0
    %493 = vmatpush1.bf16.msra.mxu0 0
    %494 = vmatprep.mubr.bf16.mxu0 0
    %495 = vmatmul.mubr.bf16.gmra.mrb[0].mxu0 %v396
    %v496 = vpop.f32.mrb[0].mxu0
    %v497 = vadd.f32 0.0, %v496
    %v498 = vpop.f32.mrb[0].mxu0
    %v499 = vpop.f32.mrb[0].mxu0
    %v500 = vadd.f32 0.0, %v499
    %v501 = vpop.f32.mrb[0].mxu0
    %502 = vdwg.mxu0
    %v503 = vpack.c.bf16 %v500, %v497
    %v504 = vld [vmem:[%s3 + $0x2] sm:$0x1]
    %v505 = vlaneseq
    %v506 = vshrl.u32 %v505, 7
    %v507 = vsub.s32 0, %v506
    %v508 = vrot.slane %v504, %v507
    %509 = vmatprep.subr.bf16.mxu0 0
    %510 = vmatpush1.bf16.msra.mxu0 %v503
    %511 = vmatprep.subr.bf16.mxu0 0
    %512 = vmatpush1.bf16.msra.mxu0 0
    %513 = vmatprep.subr.bf16.mxu0 0
    %514 = vmatpush1.bf16.msra.mxu0 0
    %515 = vmatprep.subr.bf16.mxu0 0
    %516 = vmatpush1.bf16.msra.mxu0 0
    %517 = vmatprep.subr.bf16.mxu0 0
    %518 = vmatpush1.bf16.msra.mxu0 0
    %519 = vmatprep.subr.bf16.mxu0 0
    %520 = vmatpush1.bf16.msra.mxu0 0
    %521 = vmatprep.subr.bf16.mxu0 0
    %522 = vmatpush1.bf16.msra.mxu0 0
    %523 = vmatprep.subr.bf16.mxu0 0
    %524 = vmatpush1.bf16.msra.mxu0 0
    %525 = vmatprep.subr.bf16.mxu0 0
    %526 = vmatpush1.bf16.msra.mxu0 0
    %527 = vmatprep.subr.bf16.mxu0 0
    %528 = vmatpush1.bf16.msra.mxu0 0
    %529 = vmatprep.subr.bf16.mxu0 0
    %530 = vmatpush1.bf16.msra.mxu0 0
    %531 = vmatprep.subr.bf16.mxu0 0
    %532 = vmatpush1.bf16.msra.mxu0 0
    %533 = vmatprep.subr.bf16.mxu0 0
    %534 = vmatpush1.bf16.msra.mxu0 0
    %535 = vmatprep.subr.bf16.mxu0 0
    %536 = vmatpush1.bf16.msra.mxu0 0
    %537 = vmatprep.subr.bf16.mxu0 0
    %538 = vmatpush1.bf16.msra.mxu0 0
    %539 = vmatprep.subr.bf16.mxu0 0
    %540 = vmatpush1.bf16.msra.mxu0 0
    %541 = vmatprep.mubr.bf16.mxu0 0
    %542 = vmatmul.mubr.bf16.gmra.mrb[0].mxu0 %v187
    %v543 = vpop.f32.mrb[0].mxu0
    %v544 = vadd.f32 %v508, %v543
    %v545 = vpop.f32.mrb[0].mxu0
    %v546 = vpop.f32.mrb[0].mxu0
    %v547 = vadd.f32 %v508, %v546
    %v548 = vpop.f32.mrb[0].mxu0
    %549 = vdwg.mxu0
    %v550 = vmax.f32 %v544, 0.0
    %v551 = vmax.f32 %v547, 0.0
    %552 = vst [vmem:[#allocation2] sm:$0xff] %v550
    %553 = vst [vmem:[#allocation2 + $0x8] sm:$0xff] %v551
    %v554 = vld [vmem:[#allocation2] sm:$0xff]
    %v555 = vld [vmem:[#allocation2 + $0x8] sm:$0xff]
    %v556 = vpack.c.bf16 %v555, %v554
    %s557 = scalar_lea.vmem [#allocation8], 192
    %v558 = vld [vmem:[%s557] sm:$0xf]
    %v559 = vld [vmem:[%s557 + $0x4] sm:$0xf]
    %v560 = vld [vmem:[%s557 + $0x8] sm:$0xf]
    %v561 = vld [vmem:[%s557 + $0xc] sm:$0xf]
    %v562 = vld [vmem:[%s557 + $0x10] sm:$0xf]
    %v563 = vld [vmem:[%s557 + $0x14] sm:$0xf]
    %v564 = vld [vmem:[%s557 + $0x18] sm:$0xf]
    %v565 = vld [vmem:[%s557 + $0x1c] sm:$0xf]
    %v566 = vld [vmem:[%s557 + $0x20] sm:$0xf]
    %v567 = vld [vmem:[%s557 + $0x24] sm:$0xf]
    %v568 = vld [vmem:[%s557 + $0x28] sm:$0xf]
    %v569 = vld [vmem:[%s557 + $0x2c] sm:$0xf]
    %v570 = vld [vmem:[%s557 + $0x30] sm:$0xf]
    %v571 = vld [vmem:[%s557 + $0x34] sm:$0xf]
    %v572 = vld [vmem:[%s557 + $0x38] sm:$0xf]
    %v573 = vld [vmem:[%s557 + $0x3c] sm:$0xf]
    %v590 = vunpack.c.l.b16 %v558
    %v591 = vunpack.c.l.b16 %v559
    %v592 = vunpack.c.l.b16 %v560
    %v593 = vunpack.c.l.b16 %v561
    %v594 = vunpack.c.l.b16 %v562
    %v595 = vunpack.c.l.b16 %v563
    %v596 = vunpack.c.l.b16 %v564
    %v597 = vunpack.c.l.b16 %v565
    %v598 = vunpack.c.l.b16 %v566
    %v599 = vunpack.c.l.b16 %v567
    %v600 = vunpack.c.l.b16 %v568
    %v601 = vunpack.c.l.b16 %v569
    %v602 = vunpack.c.l.b16 %v570
    %v603 = vunpack.c.l.b16 %v571
    %v604 = vunpack.c.l.b16 %v572
    %v605 = vunpack.c.l.b16 %v573
    %v606 = vpack.c.b16 %v591, %v590
    %v607 = vpack.c.b16 %v593, %v592
    %v608 = vpack.c.b16 %v595, %v594
    %v609 = vpack.c.b16 %v597, %v596
    %v610 = vpack.c.b16 %v599, %v598
    %v611 = vpack.c.b16 %v601, %v600
    %v612 = vpack.c.b16 %v603, %v602
    %v613 = vpack.c.b16 %v605, %v604
    %622 = vmatprep.subr.bf16.mxu0 0
    %623 = vmatpush1.bf16.msra.mxu0 %v606
    %624 = vmatprep.subr.bf16.mxu0 0
    %625 = vmatpush1.bf16.msra.mxu0 %v607
    %626 = vmatprep.subr.bf16.mxu0 0
    %627 = vmatpush1.bf16.msra.mxu0 %v608
    %628 = vmatprep.subr.bf16.mxu0 0
    %629 = vmatpush1.bf16.msra.mxu0 %v609
    %630 = vmatprep.subr.bf16.mxu0 0
    %631 = vmatpush1.bf16.msra.mxu0 %v610
    %632 = vmatprep.subr.bf16.mxu0 0
    %633 = vmatpush1.bf16.msra.mxu0 %v611
    %634 = vmatprep.subr.bf16.mxu0 0
    %635 = vmatpush1.bf16.msra.mxu0 %v612
    %636 = vmatprep.subr.bf16.mxu0 0
    %637 = vmatpush1.bf16.msra.mxu0 %v613
    %638 = vmatprep.subr.bf16.mxu0 0
    %639 = vmatpush1.bf16.msra.mxu0 0
    %640 = vmatprep.subr.bf16.mxu0 0
    %641 = vmatpush1.bf16.msra.mxu0 0
    %642 = vmatprep.subr.bf16.mxu0 0
    %643 = vmatpush1.bf16.msra.mxu0 0
    %644 = vmatprep.subr.bf16.mxu0 0
    %645 = vmatpush1.bf16.msra.mxu0 0
    %646 = vmatprep.subr.bf16.mxu0 0
    %647 = vmatpush1.bf16.msra.mxu0 0
    %648 = vmatprep.subr.bf16.mxu0 0
    %649 = vmatpush1.bf16.msra.mxu0 0
    %650 = vmatprep.subr.bf16.mxu0 0
    %651 = vmatpush1.bf16.msra.mxu0 0
    %652 = vmatprep.subr.bf16.mxu0 0
    %653 = vmatpush1.bf16.msra.mxu0 0
    %654 = vmatprep.mubr.bf16.mxu0 0
    %655 = vmatmul.mubr.bf16.gmra.mrb[0].mxu0 %v556
    %v656 = vpop.f32.mrb[0].mxu0
    %v657 = vadd.f32 0.0, %v656
    %v658 = vpop.f32.mrb[0].mxu0
    %v659 = vpop.f32.mrb[0].mxu0
    %v660 = vadd.f32 0.0, %v659
    %v661 = vpop.f32.mrb[0].mxu0
    %662 = vdwg.mxu0
    %v663 = vpack.c.bf16 %v660, %v657
    %v664 = vld [vmem:[%s3 + $0x3] sm:$0x1]
    %v665 = vlaneseq
    %v666 = vshrl.u32 %v665, 7
    %v667 = vsub.s32 0, %v666
    %v668 = vrot.slane %v664, %v667
    %669 = vmatprep.subr.bf16.mxu0 0
    %670 = vmatpush1.bf16.msra.mxu0 %v663
    %671 = vmatprep.subr.bf16.mxu0 0
    %672 = vmatpush1.bf16.msra.mxu0 0
    %673 = vmatprep.subr.bf16.mxu0 0
    %674 = vmatpush1.bf16.msra.mxu0 0
    %675 = vmatprep.subr.bf16.mxu0 0
    %676 = vmatpush1.bf16.msra.mxu0 0
    %677 = vmatprep.subr.bf16.mxu0 0
    %678 = vmatpush1.bf16.msra.mxu0 0
    %679 = vmatprep.subr.bf16.mxu0 0
    %680 = vmatpush1.bf16.msra.mxu0 0
    %681 = vmatprep.subr.bf16.mxu0 0
    %682 = vmatpush1.bf16.msra.mxu0 0
    %683 = vmatprep.subr.bf16.mxu0 0
    %684 = vmatpush1.bf16.msra.mxu0 0
    %685 = vmatprep.subr.bf16.mxu0 0
    %686 = vmatpush1.bf16.msra.mxu0 0
    %687 = vmatprep.subr.bf16.mxu0 0
    %688 = vmatpush1.bf16.msra.mxu0 0
    %689 = vmatprep.subr.bf16.mxu0 0
    %690 = vmatpush1.bf16.msra.mxu0 0
    %691 = vmatprep.subr.bf16.mxu0 0
    %692 = vmatpush1.bf16.msra.mxu0 0
    %693 = vmatprep.subr.bf16.mxu0 0
    %694 = vmatpush1.bf16.msra.mxu0 0
    %695 = vmatprep.subr.bf16.mxu0 0
    %696 = vmatpush1.bf16.msra.mxu0 0
    %697 = vmatprep.subr.bf16.mxu0 0
    %698 = vmatpush1.bf16.msra.mxu0 0
    %699 = vmatprep.subr.bf16.mxu0 0
    %700 = vmatpush1.bf16.msra.mxu0 0
    %701 = vmatprep.mubr.bf16.mxu0 0
    %702 = vmatmul.mubr.bf16.gmra.mrb[0].mxu0 %v187
    %v703 = vpop.f32.mrb[0].mxu0
    %v704 = vadd.f32 %v668, %v703
    %v705 = vpop.f32.mrb[0].mxu0
    %v706 = vpop.f32.mrb[0].mxu0
    %v707 = vadd.f32 %v668, %v706
    %v708 = vpop.f32.mrb[0].mxu0
    %709 = vdwg.mxu0
    %v710 = vmax.f32 %v704, 0.0
    %v711 = vmax.f32 %v707, 0.0
    %712 = vst [vmem:[#allocation2] sm:$0xff] %v710
    %713 = vst [vmem:[#allocation2 + $0x8] sm:$0xff] %v711
    %v714 = vld [vmem:[#allocation2] sm:$0xff]
    %v715 = vld [vmem:[#allocation2 + $0x8] sm:$0xff]
    %v716 = vpack.c.bf16 %v715, %v714
    %s717 = scalar_lea.vmem [#allocation8], 256
    %v718 = vld [vmem:[%s717] sm:$0xf]
    %v719 = vld [vmem:[%s717 + $0x4] sm:$0xf]
    %v720 = vld [vmem:[%s717 + $0x8] sm:$0xf]
    %v721 = vld [vmem:[%s717 + $0xc] sm:$0xf]
    %v722 = vld [vmem:[%s717 + $0x10] sm:$0xf]
    %v723 = vld [vmem:[%s717 + $0x14] sm:$0xf]
    %v724 = vld [vmem:[%s717 + $0x18] sm:$0xf]
    %v725 = vld [vmem:[%s717 + $0x1c] sm:$0xf]
    %v726 = vld [vmem:[%s717 + $0x20] sm:$0xf]
    %v727 = vld [vmem:[%s717 + $0x24] sm:$0xf]
    %v728 = vld [vmem:[%s717 + $0x28] sm:$0xf]
    %v729 = vld [vmem:[%s717 + $0x2c] sm:$0xf]
    %v730 = vld [vmem:[%s717 + $0x30] sm:$0xf]
    %v731 = vld [vmem:[%s717 + $0x34] sm:$0xf]
    %v732 = vld [vmem:[%s717 + $0x38] sm:$0xf]
    %v733 = vld [vmem:[%s717 + $0x3c] sm:$0xf]
    %v750 = vunpack.c.l.b16 %v718
    %v751 = vunpack.c.l.b16 %v719
    %v752 = vunpack.c.l.b16 %v720
    %v753 = vunpack.c.l.b16 %v721
    %v754 = vunpack.c.l.b16 %v722
    %v755 = vunpack.c.l.b16 %v723
    %v756 = vunpack.c.l.b16 %v724
    %v757 = vunpack.c.l.b16 %v725
    %v758 = vunpack.c.l.b16 %v726
    %v759 = vunpack.c.l.b16 %v727
    %v760 = vunpack.c.l.b16 %v728
    %v761 = vunpack.c.l.b16 %v729
    %v762 = vunpack.c.l.b16 %v730
    %v763 = vunpack.c.l.b16 %v731
    %v764 = vunpack.c.l.b16 %v732
    %v765 = vunpack.c.l.b16 %v733
    %v766 = vpack.c.b16 %v751, %v750
    %v767 = vpack.c.b16 %v753, %v752
    %v768 = vpack.c.b16 %v755, %v754
    %v769 = vpack.c.b16 %v757, %v756
    %v770 = vpack.c.b16 %v759, %v758
    %v771 = vpack.c.b16 %v761, %v760
    %v772 = vpack.c.b16 %v763, %v762
    %v773 = vpack.c.b16 %v765, %v764
    %782 = vmatprep.subr.bf16.mxu0 0
    %783 = vmatpush1.bf16.msra.mxu0 %v766
    %784 = vmatprep.subr.bf16.mxu0 0
    %785 = vmatpush1.bf16.msra.mxu0 %v767
    %786 = vmatprep.subr.bf16.mxu0 0
    %787 = vmatpush1.bf16.msra.mxu0 %v768
    %788 = vmatprep.subr.bf16.mxu0 0
    %789 = vmatpush1.bf16.msra.mxu0 %v769
    %790 = vmatprep.subr.bf16.mxu0 0
    %791 = vmatpush1.bf16.msra.mxu0 %v770
    %792 = vmatprep.subr.bf16.mxu0 0
    %793 = vmatpush1.bf16.msra.mxu0 %v771
    %794 = vmatprep.subr.bf16.mxu0 0
    %795 = vmatpush1.bf16.msra.mxu0 %v772
    %796 = vmatprep.subr.bf16.mxu0 0
    %797 = vmatpush1.bf16.msra.mxu0 %v773
    %798 = vmatprep.subr.bf16.mxu0 0
    %799 = vmatpush1.bf16.msra.mxu0 0
    %800 = vmatprep.subr.bf16.mxu0 0
    %801 = vmatpush1.bf16.msra.mxu0 0
    %802 = vmatprep.subr.bf16.mxu0 0
    %803 = vmatpush1.bf16.msra.mxu0 0
    %804 = vmatprep.subr.bf16.mxu0 0
    %805 = vmatpush1.bf16.msra.mxu0 0
    %806 = vmatprep.subr.bf16.mxu0 0
    %807 = vmatpush1.bf16.msra.mxu0 0
    %808 = vmatprep.subr.bf16.mxu0 0
    %809 = vmatpush1.bf16.msra.mxu0 0
    %810 = vmatprep.subr.bf16.mxu0 0
    %811 = vmatpush1.bf16.msra.mxu0 0
    %812 = vmatprep.subr.bf16.mxu0 0
    %813 = vmatpush1.bf16.msra.mxu0 0
    %814 = vmatprep.mubr.bf16.mxu0 0
    %815 = vmatmul.mubr.bf16.gmra.mrb[0].mxu0 %v716
    %v816 = vpop.f32.mrb[0].mxu0
    %v817 = vadd.f32 0.0, %v816
    %v818 = vpop.f32.mrb[0].mxu0
    %v819 = vpop.f32.mrb[0].mxu0
    %v820 = vadd.f32 0.0, %v819
    %v821 = vpop.f32.mrb[0].mxu0
    %822 = vdwg.mxu0
    %v823 = vpack.c.bf16 %v820, %v817
    %v824 = vld [vmem:[%s3 + $0x4] sm:$0x1]
    %v825 = vlaneseq
    %v826 = vshrl.u32 %v825, 7
    %v827 = vsub.s32 0, %v826
    %v828 = vrot.slane %v824, %v827
    %829 = vmatprep.subr.bf16.mxu0 0
    %830 = vmatpush1.bf16.msra.mxu0 %v823
    %831 = vmatprep.subr.bf16.mxu0 0
    %832 = vmatpush1.bf16.msra.mxu0 0
    %833 = vmatprep.subr.bf16.mxu0 0
    %834 = vmatpush1.bf16.msra.mxu0 0
    %835 = vmatprep.subr.bf16.mxu0 0
    %836 = vmatpush1.bf16.msra.mxu0 0
    %837 = vmatprep.subr.bf16.mxu0 0
    %838 = vmatpush1.bf16.msra.mxu0 0
    %839 = vmatprep.subr.bf16.mxu0 0
    %840 = vmatpush1.bf16.msra.mxu0 0
    %841 = vmatprep.subr.bf16.mxu0 0
    %842 = vmatpush1.bf16.msra.mxu0 0
    %843 = vmatprep.subr.bf16.mxu0 0
    %844 = vmatpush1.bf16.msra.mxu0 0
    %845 = vmatprep.subr.bf16.mxu0 0
    %846 = vmatpush1.bf16.msra.mxu0 0
    %847 = vmatprep.subr.bf16.mxu0 0
    %848 = vmatpush1.bf16.msra.mxu0 0
    %849 = vmatprep.subr.bf16.mxu0 0
    %850 = vmatpush1.bf16.msra.mxu0 0
    %851 = vmatprep.subr.bf16.mxu0 0
    %852 = vmatpush1.bf16.msra.mxu0 0
    %853 = vmatprep.subr.bf16.mxu0 0
    %854 = vmatpush1.bf16.msra.mxu0 0
    %855 = vmatprep.subr.bf16.mxu0 0
    %856 = vmatpush1.bf16.msra.mxu0 0
    %857 = vmatprep.subr.bf16.mxu0 0
    %858 = vmatpush1.bf16.msra.mxu0 0
    %859 = vmatprep.subr.bf16.mxu0 0
    %860 = vmatpush1.bf16.msra.mxu0 0
    %861 = vmatprep.mubr.bf16.mxu0 0
    %862 = vmatmul.mubr.bf16.gmra.mrb[0].mxu0 %v187
    %v863 = vpop.f32.mrb[0].mxu0
    %v864 = vadd.f32 %v828, %v863
    %v865 = vpop.f32.mrb[0].mxu0
    %v866 = vpop.f32.mrb[0].mxu0
    %v867 = vadd.f32 %v828, %v866
    %v868 = vpop.f32.mrb[0].mxu0
    %869 = vdwg.mxu0
    %v870 = vmax.f32 %v864, 0.0
    %v871 = vmax.f32 %v867, 0.0
    %872 = vst [vmem:[#allocation2] sm:$0xff] %v870
    %873 = vst [vmem:[#allocation2 + $0x8] sm:$0xff] %v871
    %v874 = vld [vmem:[#allocation2] sm:$0xff]
    %v875 = vld [vmem:[#allocation2 + $0x8] sm:$0xff]
    %v876 = vpack.c.bf16 %v875, %v874
    %s877 = scalar_lea.vmem [#allocation8], 320
    %v878 = vld [vmem:[%s877] sm:$0xf]
    %v879 = vld [vmem:[%s877 + $0x4] sm:$0xf]
    %v880 = vld [vmem:[%s877 + $0x8] sm:$0xf]
    %v881 = vld [vmem:[%s877 + $0xc] sm:$0xf]
    %v882 = vld [vmem:[%s877 + $0x10] sm:$0xf]
    %v883 = vld [vmem:[%s877 + $0x14] sm:$0xf]
    %v884 = vld [vmem:[%s877 + $0x18] sm:$0xf]
    %v885 = vld [vmem:[%s877 + $0x1c] sm:$0xf]
    %v886 = vld [vmem:[%s877 + $0x20] sm:$0xf]
    %v887 = vld [vmem:[%s877 + $0x24] sm:$0xf]
    %v888 = vld [vmem:[%s877 + $0x28] sm:$0xf]
    %v889 = vld [vmem:[%s877 + $0x2c] sm:$0xf]
    %v890 = vld [vmem:[%s877 + $0x30] sm:$0xf]
    %v891 = vld [vmem:[%s877 + $0x34] sm:$0xf]
    %v892 = vld [vmem:[%s877 + $0x38] sm:$0xf]
    %v893 = vld [vmem:[%s877 + $0x3c] sm:$0xf]
    %v910 = vunpack.c.l.b16 %v878
    %v911 = vunpack.c.l.b16 %v879
    %v912 = vunpack.c.l.b16 %v880
    %v913 = vunpack.c.l.b16 %v881
    %v914 = vunpack.c.l.b16 %v882
    %v915 = vunpack.c.l.b16 %v883
    %v916 = vunpack.c.l.b16 %v884
    %v917 = vunpack.c.l.b16 %v885
    %v918 = vunpack.c.l.b16 %v886
    %v919 = vunpack.c.l.b16 %v887
    %v920 = vunpack.c.l.b16 %v888
    %v921 = vunpack.c.l.b16 %v889
    %v922 = vunpack.c.l.b16 %v890
    %v923 = vunpack.c.l.b16 %v891
    %v924 = vunpack.c.l.b16 %v892
    %v925 = vunpack.c.l.b16 %v893
    %v926 = vpack.c.b16 %v911, %v910
    %v927 = vpack.c.b16 %v913, %v912
    %v928 = vpack.c.b16 %v915, %v914
    %v929 = vpack.c.b16 %v917, %v916
    %v930 = vpack.c.b16 %v919, %v918
    %v931 = vpack.c.b16 %v921, %v920
    %v932 = vpack.c.b16 %v923, %v922
    %v933 = vpack.c.b16 %v925, %v924
    %942 = vmatprep.subr.bf16.mxu0 0
    %943 = vmatpush1.bf16.msra.mxu0 %v926
    %944 = vmatprep.subr.bf16.mxu0 0
    %945 = vmatpush1.bf16.msra.mxu0 %v927
    %946 = vmatprep.subr.bf16.mxu0 0
    %947 = vmatpush1.bf16.msra.mxu0 %v928
    %948 = vmatprep.subr.bf16.mxu0 0
    %949 = vmatpush1.bf16.msra.mxu0 %v929
    %950 = vmatprep.subr.bf16.mxu0 0
    %951 = vmatpush1.bf16.msra.mxu0 %v930
    %952 = vmatprep.subr.bf16.mxu0 0
    %953 = vmatpush1.bf16.msra.mxu0 %v931
    %954 = vmatprep.subr.bf16.mxu0 0
    %955 = vmatpush1.bf16.msra.mxu0 %v932
    %956 = vmatprep.subr.bf16.mxu0 0
    %957 = vmatpush1.bf16.msra.mxu0 %v933
    %958 = vmatprep.subr.bf16.mxu0 0
    %959 = vmatpush1.bf16.msra.mxu0 0
    %960 = vmatprep.subr.bf16.mxu0 0
    %961 = vmatpush1.bf16.msra.mxu0 0
    %962 = vmatprep.subr.bf16.mxu0 0
    %963 = vmatpush1.bf16.msra.mxu0 0
    %964 = vmatprep.subr.bf16.mxu0 0
    %965 = vmatpush1.bf16.msra.mxu0 0
    %966 = vmatprep.subr.bf16.mxu0 0
    %967 = vmatpush1.bf16.msra.mxu0 0
    %968 = vmatprep.subr.bf16.mxu0 0
    %969 = vmatpush1.bf16.msra.mxu0 0
    %970 = vmatprep.subr.bf16.mxu0 0
    %971 = vmatpush1.bf16.msra.mxu0 0
    %972 = vmatprep.subr.bf16.mxu0 0
    %973 = vmatpush1.bf16.msra.mxu0 0
    %974 = vmatprep.mubr.bf16.mxu0 0
    %975 = vmatmul.mubr.bf16.gmra.mrb[0].mxu0 %v876
    %v976 = vpop.f32.mrb[0].mxu0
    %v977 = vadd.f32 0.0, %v976
    %v978 = vpop.f32.mrb[0].mxu0
    %v979 = vpop.f32.mrb[0].mxu0
    %v980 = vadd.f32 0.0, %v979
    %v981 = vpop.f32.mrb[0].mxu0
    %982 = vdwg.mxu0
    %v983 = vpack.c.bf16 %v980, %v977
    %v984 = vld [vmem:[%s3 + $0x5] sm:$0x1]
    %v985 = vlaneseq
    %v986 = vshrl.u32 %v985, 7
    %v987 = vsub.s32 0, %v986
    %v988 = vrot.slane %v984, %v987
    %989 = vmatprep.subr.bf16.mxu0 0
    %990 = vmatpush1.bf16.msra.mxu0 %v983
    %991 = vmatprep.subr.bf16.mxu0 0
    %992 = vmatpush1.bf16.msra.mxu0 0
    %993 = vmatprep.subr.bf16.mxu0 0
    %994 = vmatpush1.bf16.msra.mxu0 0
    %995 = vmatprep.subr.bf16.mxu0 0
    %996 = vmatpush1.bf16.msra.mxu0 0
    %997 = vmatprep.subr.bf16.mxu0 0
    %998 = vmatpush1.bf16.msra.mxu0 0
    %999 = vmatprep.subr.bf16.mxu0 0
    %1000 = vmatpush1.bf16.msra.mxu0 0
    %1001 = vmatprep.subr.bf16.mxu0 0
    %1002 = vmatpush1.bf16.msra.mxu0 0
    %1003 = vmatprep.subr.bf16.mxu0 0
    %1004 = vmatpush1.bf16.msra.mxu0 0
    %1005 = vmatprep.subr.bf16.mxu0 0
    %1006 = vmatpush1.bf16.msra.mxu0 0
    %1007 = vmatprep.subr.bf16.mxu0 0
    %1008 = vmatpush1.bf16.msra.mxu0 0
    %1009 = vmatprep.subr.bf16.mxu0 0
    %1010 = vmatpush1.bf16.msra.mxu0 0
    %1011 = vmatprep.subr.bf16.mxu0 0
    %1012 = vmatpush1.bf16.msra.mxu0 0
    %1013 = vmatprep.subr.bf16.mxu0 0
    %1014 = vmatpush1.bf16.msra.mxu0 0
    %1015 = vmatprep.subr.bf16.mxu0 0
    %1016 = vmatpush1.bf16.msra.mxu0 0
    %1017 = vmatprep.subr.bf16.mxu0 0
    %1018 = vmatpush1.bf16.msra.mxu0 0
    %1019 = vmatprep.subr.bf16.mxu0 0
    %1020 = vmatpush1.bf16.msra.mxu0 0
    %1021 = vmatprep.mubr.bf16.mxu0 0
    %1022 = vmatmul.mubr.bf16.gmra.mrb[0].mxu0 %v187
    %v1023 = vpop.f32.mrb[0].mxu0
    %v1024 = vadd.f32 %v988, %v1023
    %v1025 = vpop.f32.mrb[0].mxu0
    %v1026 = vpop.f32.mrb[0].mxu0
    %v1027 = vadd.f32 %v988, %v1026
    %v1028 = vpop.f32.mrb[0].mxu0
    %1029 = vdwg.mxu0
    %v1030 = vmax.f32 %v1024, 0.0
    %v1031 = vmax.f32 %v1027, 0.0
    %1032 = vst [vmem:[#allocation2] sm:$0xff] %v1030
    %1033 = vst [vmem:[#allocation2 + $0x8] sm:$0xff] %v1031
    %v1034 = vld [vmem:[#allocation2] sm:$0xff]
    %v1035 = vld [vmem:[#allocation2 + $0x8] sm:$0xff]
    %v1036 = vpack.c.bf16 %v1035, %v1034
    %s1037 = scalar_lea.vmem [#allocation8], 384
    %v1038 = vld [vmem:[%s1037] sm:$0xf]
    %v1039 = vld [vmem:[%s1037 + $0x4] sm:$0xf]
    %v1040 = vld [vmem:[%s1037 + $0x8] sm:$0xf]
    %v1041 = vld [vmem:[%s1037 + $0xc] sm:$0xf]
    %v1042 = vld [vmem:[%s1037 + $0x10] sm:$0xf]
    %v1043 = vld [vmem:[%s1037 + $0x14] sm:$0xf]
    %v1044 = vld [vmem:[%s1037 + $0x18] sm:$0xf]
    %v1045 = vld [vmem:[%s1037 + $0x1c] sm:$0xf]
    %v1046 = vld [vmem:[%s1037 + $0x20] sm:$0xf]
    %v1047 = vld [vmem:[%s1037 + $0x24] sm:$0xf]
    %v1048 = vld [vmem:[%s1037 + $0x28] sm:$0xf]
    %v1049 = vld [vmem:[%s1037 + $0x2c] sm:$0xf]
    %v1050 = vld [vmem:[%s1037 + $0x30] sm:$0xf]
    %v1051 = vld [vmem:[%s1037 + $0x34] sm:$0xf]
    %v1052 = vld [vmem:[%s1037 + $0x38] sm:$0xf]
    %v1053 = vld [vmem:[%s1037 + $0x3c] sm:$0xf]
    %v1070 = vunpack.c.l.b16 %v1038
    %v1071 = vunpack.c.l.b16 %v1039
    %v1072 = vunpack.c.l.b16 %v1040
    %v1073 = vunpack.c.l.b16 %v1041
    %v1074 = vunpack.c.l.b16 %v1042
    %v1075 = vunpack.c.l.b16 %v1043
    %v1076 = vunpack.c.l.b16 %v1044
    %v1077 = vunpack.c.l.b16 %v1045
    %v1078 = vunpack.c.l.b16 %v1046
    %v1079 = vunpack.c.l.b16 %v1047
    %v1080 = vunpack.c.l.b16 %v1048
    %v1081 = vunpack.c.l.b16 %v1049
    %v1082 = vunpack.c.l.b16 %v1050
    %v1083 = vunpack.c.l.b16 %v1051
    %v1084 = vunpack.c.l.b16 %v1052
    %v1085 = vunpack.c.l.b16 %v1053
    %v1086 = vpack.c.b16 %v1071, %v1070
    %v1087 = vpack.c.b16 %v1073, %v1072
    %v1088 = vpack.c.b16 %v1075, %v1074
    %v1089 = vpack.c.b16 %v1077, %v1076
    %v1090 = vpack.c.b16 %v1079, %v1078
    %v1091 = vpack.c.b16 %v1081, %v1080
    %v1092 = vpack.c.b16 %v1083, %v1082
    %v1093 = vpack.c.b16 %v1085, %v1084
    %1102 = vmatprep.subr.bf16.mxu0 0
    %1103 = vmatpush1.bf16.msra.mxu0 %v1086
    %1104 = vmatprep.subr.bf16.mxu0 0
    %1105 = vmatpush1.bf16.msra.mxu0 %v1087
    %1106 = vmatprep.subr.bf16.mxu0 0
    %1107 = vmatpush1.bf16.msra.mxu0 %v1088
    %1108 = vmatprep.subr.bf16.mxu0 0
    %1109 = vmatpush1.bf16.msra.mxu0 %v1089
    %1110 = vmatprep.subr.bf16.mxu0 0
    %1111 = vmatpush1.bf16.msra.mxu0 %v1090
    %1112 = vmatprep.subr.bf16.mxu0 0
    %1113 = vmatpush1.bf16.msra.mxu0 %v1091
    %1114 = vmatprep.subr.bf16.mxu0 0
    %1115 = vmatpush1.bf16.msra.mxu0 %v1092
    %1116 = vmatprep.subr.bf16.mxu0 0
    %1117 = vmatpush1.bf16.msra.mxu0 %v1093
    %1118 = vmatprep.subr.bf16.mxu0 0
    %1119 = vmatpush1.bf16.msra.mxu0 0
    %1120 = vmatprep.subr.bf16.mxu0 0
    %1121 = vmatpush1.bf16.msra.mxu0 0
    %1122 = vmatprep.subr.bf16.mxu0 0
    %1123 = vmatpush1.bf16.msra.mxu0 0
    %1124 = vmatprep.subr.bf16.mxu0 0
    %1125 = vmatpush1.bf16.msra.mxu0 0
    %1126 = vmatprep.subr.bf16.mxu0 0
    %1127 = vmatpush1.bf16.msra.mxu0 0
    %1128 = vmatprep.subr.bf16.mxu0 0
    %1129 = vmatpush1.bf16.msra.mxu0 0
    %1130 = vmatprep.subr.bf16.mxu0 0
    %1131 = vmatpush1.bf16.msra.mxu0 0
    %1132 = vmatprep.subr.bf16.mxu0 0
    %1133 = vmatpush1.bf16.msra.mxu0 0
    %1134 = vmatprep.mubr.bf16.mxu0 0
    %1135 = vmatmul.mubr.bf16.gmra.mrb[0].mxu0 %v1036
    %v1136 = vpop.f32.mrb[0].mxu0
    %v1137 = vadd.f32 0.0, %v1136
    %v1138 = vpop.f32.mrb[0].mxu0
    %v1139 = vpop.f32.mrb[0].mxu0
    %v1140 = vadd.f32 0.0, %v1139
    %v1141 = vpop.f32.mrb[0].mxu0
    %1142 = vdwg.mxu0
    %v1143 = vpack.c.bf16 %v1140, %v1137
    %v1144 = vld [vmem:[%s3 + $0x6] sm:$0x1]
    %v1145 = vlaneseq
    %v1146 = vshrl.u32 %v1145, 7
    %v1147 = vsub.s32 0, %v1146
    %v1148 = vrot.slane %v1144, %v1147
    %1149 = vmatprep.subr.bf16.mxu0 0
    %1150 = vmatpush1.bf16.msra.mxu0 %v1143
    %1151 = vmatprep.subr.bf16.mxu0 0
    %1152 = vmatpush1.bf16.msra.mxu0 0
    %1153 = vmatprep.subr.bf16.mxu0 0
    %1154 = vmatpush1.bf16.msra.mxu0 0
    %1155 = vmatprep.subr.bf16.mxu0 0
    %1156 = vmatpush1.bf16.msra.mxu0 0
    %1157 = vmatprep.subr.bf16.mxu0 0
    %1158 = vmatpush1.bf16.msra.mxu0 0
    %1159 = vmatprep.subr.bf16.mxu0 0
    %1160 = vmatpush1.bf16.msra.mxu0 0
    %1161 = vmatprep.subr.bf16.mxu0 0
    %1162 = vmatpush1.bf16.msra.mxu0 0
    %1163 = vmatprep.subr.bf16.mxu0 0
    %1164 = vmatpush1.bf16.msra.mxu0 0
    %1165 = vmatprep.subr.bf16.mxu0 0
    %1166 = vmatpush1.bf16.msra.mxu0 0
    %1167 = vmatprep.subr.bf16.mxu0 0
    %1168 = vmatpush1.bf16.msra.mxu0 0
    %1169 = vmatprep.subr.bf16.mxu0 0
    %1170 = vmatpush1.bf16.msra.mxu0 0
    %1171 = vmatprep.subr.bf16.mxu0 0
    %1172 = vmatpush1.bf16.msra.mxu0 0
    %1173 = vmatprep.subr.bf16.mxu0 0
    %1174 = vmatpush1.bf16.msra.mxu0 0
    %1175 = vmatprep.subr.bf16.mxu0 0
    %1176 = vmatpush1.bf16.msra.mxu0 0
    %1177 = vmatprep.subr.bf16.mxu0 0
    %1178 = vmatpush1.bf16.msra.mxu0 0
    %1179 = vmatprep.subr.bf16.mxu0 0
    %1180 = vmatpush1.bf16.msra.mxu0 0
    %1181 = vmatprep.mubr.bf16.mxu0 0
    %1182 = vmatmul.mubr.bf16.gmra.mrb[0].mxu0 %v187
    %v1183 = vpop.f32.mrb[0].mxu0
    %v1184 = vadd.f32 %v1148, %v1183
    %v1185 = vpop.f32.mrb[0].mxu0
    %v1186 = vpop.f32.mrb[0].mxu0
    %v1187 = vadd.f32 %v1148, %v1186
    %v1188 = vpop.f32.mrb[0].mxu0
    %1189 = vdwg.mxu0
    %v1190 = vmax.f32 %v1184, 0.0
    %v1191 = vmax.f32 %v1187, 0.0
    %1192 = vst [vmem:[#allocation2] sm:$0xff] %v1190
    %1193 = vst [vmem:[#allocation2 + $0x8] sm:$0xff] %v1191
    %v1194 = vld [vmem:[#allocation2] sm:$0xff]
    %v1195 = vld [vmem:[#allocation2 + $0x8] sm:$0xff]
    %v1196 = vpack.c.bf16 %v1195, %v1194
    %s1197 = scalar_lea.vmem [#allocation8], 448
    %v1198 = vld [vmem:[%s1197] sm:$0xf]
    %v1199 = vld [vmem:[%s1197 + $0x4] sm:$0xf]
    %v1200 = vld [vmem:[%s1197 + $0x8] sm:$0xf]
    %v1201 = vld [vmem:[%s1197 + $0xc] sm:$0xf]
    %v1202 = vld [vmem:[%s1197 + $0x10] sm:$0xf]
    %v1203 = vld [vmem:[%s1197 + $0x14] sm:$0xf]
    %v1204 = vld [vmem:[%s1197 + $0x18] sm:$0xf]
    %v1205 = vld [vmem:[%s1197 + $0x1c] sm:$0xf]
    %v1206 = vld [vmem:[%s1197 + $0x20] sm:$0xf]
    %v1207 = vld [vmem:[%s1197 + $0x24] sm:$0xf]
    %v1208 = vld [vmem:[%s1197 + $0x28] sm:$0xf]
    %v1209 = vld [vmem:[%s1197 + $0x2c] sm:$0xf]
    %v1210 = vld [vmem:[%s1197 + $0x30] sm:$0xf]
    %v1211 = vld [vmem:[%s1197 + $0x34] sm:$0xf]
    %v1212 = vld [vmem:[%s1197 + $0x38] sm:$0xf]
    %v1213 = vld [vmem:[%s1197 + $0x3c] sm:$0xf]
    %v1230 = vunpack.c.l.b16 %v1198
    %v1231 = vunpack.c.l.b16 %v1199
    %v1232 = vunpack.c.l.b16 %v1200
    %v1233 = vunpack.c.l.b16 %v1201
    %v1234 = vunpack.c.l.b16 %v1202
    %v1235 = vunpack.c.l.b16 %v1203
    %v1236 = vunpack.c.l.b16 %v1204
    %v1237 = vunpack.c.l.b16 %v1205
    %v1238 = vunpack.c.l.b16 %v1206
    %v1239 = vunpack.c.l.b16 %v1207
    %v1240 = vunpack.c.l.b16 %v1208
    %v1241 = vunpack.c.l.b16 %v1209
    %v1242 = vunpack.c.l.b16 %v1210
    %v1243 = vunpack.c.l.b16 %v1211
    %v1244 = vunpack.c.l.b16 %v1212
    %v1245 = vunpack.c.l.b16 %v1213
    %v1246 = vpack.c.b16 %v1231, %v1230
    %v1247 = vpack.c.b16 %v1233, %v1232
    %v1248 = vpack.c.b16 %v1235, %v1234
    %v1249 = vpack.c.b16 %v1237, %v1236
    %v1250 = vpack.c.b16 %v1239, %v1238
    %v1251 = vpack.c.b16 %v1241, %v1240
    %v1252 = vpack.c.b16 %v1243, %v1242
    %v1253 = vpack.c.b16 %v1245, %v1244
    %1262 = vmatprep.subr.bf16.mxu0 0
    %1263 = vmatpush1.bf16.msra.mxu0 %v1246
    %1264 = vmatprep.subr.bf16.mxu0 0
    %1265 = vmatpush1.bf16.msra.mxu0 %v1247
    %1266 = vmatprep.subr.bf16.mxu0 0
    %1267 = vmatpush1.bf16.msra.mxu0 %v1248
    %1268 = vmatprep.subr.bf16.mxu0 0
    %1269 = vmatpush1.bf16.msra.mxu0 %v1249
    %1270 = vmatprep.subr.bf16.mxu0 0
    %1271 = vmatpush1.bf16.msra.mxu0 %v1250
    %1272 = vmatprep.subr.bf16.mxu0 0
    %1273 = vmatpush1.bf16.msra.mxu0 %v1251
    %1274 = vmatprep.subr.bf16.mxu0 0
    %1275 = vmatpush1.bf16.msra.mxu0 %v1252
    %1276 = vmatprep.subr.bf16.mxu0 0
    %1277 = vmatpush1.bf16.msra.mxu0 %v1253
    %1278 = vmatprep.subr.bf16.mxu0 0
    %1279 = vmatpush1.bf16.msra.mxu0 0
    %1280 = vmatprep.subr.bf16.mxu0 0
    %1281 = vmatpush1.bf16.msra.mxu0 0
    %1282 = vmatprep.subr.bf16.mxu0 0
    %1283 = vmatpush1.bf16.msra.mxu0 0
    %1284 = vmatprep.subr.bf16.mxu0 0
    %1285 = vmatpush1.bf16.msra.mxu0 0
    %1286 = vmatprep.subr.bf16.mxu0 0
    %1287 = vmatpush1.bf16.msra.mxu0 0
    %1288 = vmatprep.subr.bf16.mxu0 0
    %1289 = vmatpush1.bf16.msra.mxu0 0
    %1290 = vmatprep.subr.bf16.mxu0 0
    %1291 = vmatpush1.bf16.msra.mxu0 0
    %1292 = vmatprep.subr.bf16.mxu0 0
    %1293 = vmatpush1.bf16.msra.mxu0 0
    %1294 = vmatprep.mubr.bf16.mxu0 0
    %1295 = vmatmul.mubr.bf16.gmra.mrb[0].mxu0 %v1196
    %v1296 = vpop.f32.mrb[0].mxu0
    %v1297 = vadd.f32 0.0, %v1296
    %v1298 = vpop.f32.mrb[0].mxu0
    %v1299 = vpop.f32.mrb[0].mxu0
    %v1300 = vadd.f32 0.0, %v1299
    %v1301 = vpop.f32.mrb[0].mxu0
    %1302 = vdwg.mxu0
    %v1303 = vpack.c.bf16 %v1300, %v1297
    %v1304 = vld [vmem:[%s3 + $0x7] sm:$0x1]
    %v1305 = vlaneseq
    %v1306 = vshrl.u32 %v1305, 7
    %v1307 = vsub.s32 0, %v1306
    %v1308 = vrot.slane %v1304, %v1307
    %1309 = vmatprep.subr.bf16.mxu0 0
    %1310 = vmatpush1.bf16.msra.mxu0 %v1303
    %1311 = vmatprep.subr.bf16.mxu0 0
    %1312 = vmatpush1.bf16.msra.mxu0 0
    %1313 = vmatprep.subr.bf16.mxu0 0
    %1314 = vmatpush1.bf16.msra.mxu0 0
    %1315 = vmatprep.subr.bf16.mxu0 0
    %1316 = vmatpush1.bf16.msra.mxu0 0
    %1317 = vmatprep.subr.bf16.mxu0 0
    %1318 = vmatpush1.bf16.msra.mxu0 0
    %1319 = vmatprep.subr.bf16.mxu0 0
    %1320 = vmatpush1.bf16.msra.mxu0 0
    %1321 = vmatprep.subr.bf16.mxu0 0
    %1322 = vmatpush1.bf16.msra.mxu0 0
    %1323 = vmatprep.subr.bf16.mxu0 0
    %1324 = vmatpush1.bf16.msra.mxu0 0
    %1325 = vmatprep.subr.bf16.mxu0 0
    %1326 = vmatpush1.bf16.msra.mxu0 0
    %1327 = vmatprep.subr.bf16.mxu0 0
    %1328 = vmatpush1.bf16.msra.mxu0 0
    %1329 = vmatprep.subr.bf16.mxu0 0
    %1330 = vmatpush1.bf16.msra.mxu0 0
    %1331 = vmatprep.subr.bf16.mxu0 0
    %1332 = vmatpush1.bf16.msra.mxu0 0
    %1333 = vmatprep.subr.bf16.mxu0 0
    %1334 = vmatpush1.bf16.msra.mxu0 0
    %1335 = vmatprep.subr.bf16.mxu0 0
    %1336 = vmatpush1.bf16.msra.mxu0 0
    %1337 = vmatprep.subr.bf16.mxu0 0
    %1338 = vmatpush1.bf16.msra.mxu0 0
    %1339 = vmatprep.subr.bf16.mxu0 0
    %1340 = vmatpush1.bf16.msra.mxu0 0
    %1341 = vmatprep.mubr.bf16.mxu0 0
    %1342 = vmatmul.mubr.bf16.gmra.mrb[0].mxu0 %v187
    %v1343 = vpop.f32.mrb[0].mxu0
    %v1344 = vadd.f32 %v1308, %v1343
    %v1345 = vpop.f32.mrb[0].mxu0
    %v1346 = vpop.f32.mrb[0].mxu0
    %v1347 = vadd.f32 %v1308, %v1346
    %v1348 = vpop.f32.mrb[0].mxu0
    %1349 = vdwg.mxu0
    %v1350 = vxor.u32 %v1344, 2147483648
    %v1351 = vxor.u32 %v1347, 2147483648
    %v1352 = vmul.f32 %v1350, 1.442695
    %v1353 = vpow.pop %v1352
    %v1354 = vmul.f32 %v1351, 1.442695
    %v1355 = vpow.pop %v1354
    %v1356 = vadd.f32 %v1353, 1.0
    %v1357 = vadd.f32 %v1355, 1.0
    %v1358 = vrcp.pop %v1356
    %v1359 = vmul.f32 1.0, %v1358
    %v1360 = vrcp.pop %v1357
    %v1361 = vmul.f32 1.0, %v1360
    %1362 = vst [vmem:[#allocation9] sm:$0xff] %v1359
    %1363 = vst [vmem:[#allocation9 + $0x8] sm:$0xff] %v1361
    // Predicated region
    $region30: #{tpu_custom_call.1} parent=1 // pred_check
      _
    $region31: #{tpu_custom_call.1} parent=1 // pred_check_branch
      %1365 = sbr.rel (0) target = $region33
    $region32: #{tpu_custom_call.1} parent=1 // pred_region
      %s1367 = ssub.s32 256, 256
      %1368 = vsyncadd [#allocation5], %s1367
      %s1369 = sshll.u32 [#allocation9], 4
      %s1370 = int_to_ptr.vmem [resolvable:$true] %s1369
      %1375 = dma.vmem_to_hbm [thread:$0]  %s1370, 256, %s4, [#allocation5], 128, 128, 8
    $region33: #{tpu_custom_call.1} parent=1 // pred_fallthru
      _
    // Predicated region
    $region34: #{tpu_custom_call.1} parent=1 // pred_check
      _
    $region35: #{tpu_custom_call.1} parent=1 // pred_check_branch
      %1377 = sbr.rel (0) target = $region37
    $region36: #{tpu_custom_call.1} parent=1 // pred_region
      %1378 = dma.done [#allocation5], 256
    $region37: #{tpu_custom_call.1} parent=1 // pred_fallthru
      _
    %1379 = vsyncpa [#allocation4], 1
    %1380 = vsyncpa [#allocation7], 1
    %1381 = vsyncpa [#allocation5], 1

</llo_original>
